<compile_context>
chip_gen: v7x
topology: tpu7x:2x2x1
jax: 0.10.0
libtpu: 0.0.40
codegen_flags: <defaults>
</compile_context>

<pallas_src>
import functools

import jax
import jax.numpy as jnp
from jax import lax
from jax.experimental import pallas as pl
from jax.experimental.pallas import tpu as pltpu

# ---- model / problem sizes (small, consistent with the module) ----------------
VOCAB     = 50
VOCAB_PAD = 128    # lane-padded vocab (one full lane block for the one-hot operand)
MAX_LEN   = 16     # max_len
EMB       = 32     # embedding dim
HID       = 32     # hidden_num (conv out channels per block)
NCLS      = 8      # class_num
LANE      = 128    # TPU lane width; every slab is padded to this
KSIZES    = (2, 3, 4)
NTAPS     = sum(KSIZES)    # 9 conv taps total
B_TILE    = 8      # sequences per grid step (sweep 128-512 for production batches)
BATCH     = 16     # demo batch (2 grid steps)


# ---- Pallas kernel -------------------------------------------------------------
def textcnn_kernel(idx_ref, table_ref, bconv_ref, wcls_ref, bcls_ref, out_ref):
    # 1) one-hot (bf16) @ fused (embedding . conv-taps) table -> all 9 tap projections.
    tok  = idx_ref[...]                                                       # (B_TILE*MAX_LEN, 1) int32
    iota = lax.broadcasted_iota(jnp.int32, (B_TILE * MAX_LEN, VOCAB_PAD), 1)
    onehot = (tok == iota).astype(jnp.bfloat16)                               # (B_TILE*MAX_LEN, VOCAB_PAD)
    proj = jnp.dot(onehot, table_ref[...],
                   preferred_element_type=jnp.float32)                        # (B_TILE*MAX_LEN, 9*128) f32
    # Layout-free sublane split: MAX_LEN=16 is a multiple of 8.
    proj = proj.reshape(B_TILE, MAX_LEN, NTAPS * LANE)

    # 2) per block: shift-add the lane-aligned tap slabs over time, then max-pool over time.
    pooled = []
    tap = 0
    for ks in KSIZES:
        L = MAX_LEN - ks + 1
        acc = proj[:, 0:L, tap * LANE:(tap + 1) * LANE]
        for i in range(1, ks):
            acc = acc + proj[:, i:i + L, (tap + i) * LANE:(tap + i + 1) * LANE]
        pooled.append(jnp.max(acc, axis=1))                                   # (B_TILE, 128)
        tap += ks

    # 3) bias + ReLU once on the lane-dense (B_TILE, 3*128) tile; classifier matmul;
    #    lane-dense (B_TILE, 128) store.  Padded lanes are exactly zero throughout.
    feature = jnp.concatenate(pooled, axis=-1)                                # (B_TILE, 3*128)
    feature = jnp.maximum(feature + bconv_ref[...], 0.0).astype(jnp.bfloat16)
    out_ref[...] = (jnp.dot(feature, wcls_ref[...],
                            preferred_element_type=jnp.float32) + bcls_ref[...])


# ---- host-side one-time parameter re-layout ------------------------------------
def _pack_weights(emb_table, params):
    (w2, b2), (w3, b3), (w4, b4), (wl, bl) = params     # PyTorch layouts
    fused_cols, biases = [], []
    for ks, w, b in ((2, w2, b2), (3, w3, b3), (4, w4, b4)):
        wt = jnp.transpose(w[:, 0], (1, 2, 0)).astype(jnp.float32)            # (ks, EMB, HID)
        for i in range(ks):
            col = emb_table.astype(jnp.float32) @ wt[i]                        # (VOCAB, HID), fold gather in
            fused_cols.append(jnp.pad(col, ((0, VOCAB_PAD - VOCAB), (0, LANE - HID))))
        biases.append(jnp.pad(b.reshape(1, HID).astype(jnp.float32),
                              ((0, 0), (0, LANE - HID))))
    table_fused = jnp.concatenate(fused_cols, axis=1).astype(jnp.bfloat16)     # (VOCAB_PAD, 9*128)
    b_conv = jnp.concatenate(biases, axis=1)                                   # (1, 3*128) f32

    wc = wl.T.astype(jnp.float32)                                              # (3*HID, NCLS)
    wc_pad = jnp.zeros((3 * LANE, LANE), jnp.float32)
    for k in range(3):
        wc_pad = wc_pad.at[k * LANE:k * LANE + HID, :NCLS].set(wc[k * HID:(k + 1) * HID, :])
    wc_pad = wc_pad.astype(jnp.bfloat16)                                       # (3*128, 128)
    bc_pad = jnp.pad(bl.reshape(1, NCLS).astype(jnp.float32),
                     ((0, 0), (0, LANE - NCLS)))                               # (1, 128)
    return table_fused, b_conv, wc_pad, bc_pad


@functools.partial(jax.jit, static_argnames=())
def textcnn_forward(batch_idx, emb_table, params):
    """batch_idx: (B, MAX_LEN) int; params in PyTorch layouts. Returns (B, NCLS) f32."""
    table_fused, b_conv, wc_pad, bc_pad = _pack_weights(emb_table, params)

    B = batch_idx.shape[0]
    n_tiles = pl.cdiv(B, B_TILE)
    B_padded = n_tiles * B_TILE
    idx = batch_idx.astype(jnp.int32)
    if B_padded != B:
        idx = jnp.pad(idx, ((0, B_padded - B), (0, 0)))
    idx = idx.reshape(B_padded * MAX_LEN, 1)

    out = pl.pallas_call(
        textcnn_kernel,
        out_shape=jax.ShapeDtypeStruct((B_padded, LANE), jnp.float32),
        grid=(n_tiles,),
        in_specs=[
            pl.BlockSpec((B_TILE * MAX_LEN, 1), lambda i: (i, 0)),             # per-tile token ids
            pl.BlockSpec(table_fused.shape, lambda i: (0, 0)),                 # VMEM-resident weights
            pl.BlockSpec(b_conv.shape, lambda i: (0, 0)),
            pl.BlockSpec(wc_pad.shape, lambda i: (0, 0)),
            pl.BlockSpec(bc_pad.shape, lambda i: (0, 0)),
        ],
        out_specs=pl.BlockSpec((B_TILE, LANE), lambda i: (i, 0)),
        compiler_params=pltpu.CompilerParams(
            dimension_semantics=("parallel",)),                                # v7x: both TCs
    )(idx, table_fused, b_conv, wc_pad, bc_pad)
    return out[:B, :NCLS]


# ---- pure-JAX f32 reference for correctness checking ----------------------------
def textcnn_reference(batch_idx, emb_table, params):
    (w2, b2), (w3, b3), (w4, b4), (wl, bl) = params
    emb = jnp.take(emb_table, batch_idx, axis=0)                               # (B, L, E)
    feats = []
    for ks, w, b in ((2, w2, b2), (3, w3, b3), (4, w4, b4)):
        wt = jnp.transpose(w[:, 0], (1, 2, 0))                                 # (ks, E, H)
        L = MAX_LEN - ks + 1
        acc = jnp.zeros((emb.shape[0], L, HID), jnp.float32)
        for i in range(ks):
            acc = acc + jnp.einsum("ble,eh->blh", emb[:, i:i + L, :], wt[i])
        acc = jnp.maximum(acc + b[None, None, :], 0.0)                         # bias + ReLU (Torch order)
        feats.append(jnp.max(acc, axis=1))                                     # (B, HID)
    feature = jnp.concatenate(feats, axis=1)                                   # (B, 3*HID)
    return feature @ wl.T + bl[None, :]


if __name__ == "__main__":
    key = jax.random.PRNGKey(0)
    k = jax.random.split(key, 10)

    # Deterministic synthetic parameters in the real PyTorch layouts.
    emb_table = jax.random.normal(k[0], (VOCAB, EMB), jnp.float32) * 0.1
    w2 = jax.random.normal(k[1], (HID, 1, 2, EMB), jnp.float32) * 0.1          # Conv2d ks=2 weight
    b2 = jax.random.normal(k[2], (HID,), jnp.float32) * 0.1
    w3 = jax.random.normal(k[3], (HID, 1, 3, EMB), jnp.float32) * 0.1          # Conv2d ks=3 weight
    b3 = jax.random.normal(k[4], (HID,), jnp.float32) * 0.1
    w4 = jax.random.normal(k[5], (HID, 1, 4, EMB), jnp.float32) * 0.1          # Conv2d ks=4 weight
    b4 = jax.random.normal(k[6], (HID,), jnp.float32) * 0.1
    wl = jax.random.normal(k[7], (NCLS, 3 * HID), jnp.float32) * 0.1           # Linear weight
    bl = jax.random.normal(k[8], (NCLS,), jnp.float32) * 0.1
    params = ((w2, b2), (w3, b3), (w4, b4), (wl, bl))

    batch_idx = jax.random.randint(k[9], (BATCH, MAX_LEN), 0, VOCAB, dtype=jnp.int32)

    out = jax.block_until_ready(textcnn_forward(batch_idx, emb_table, params))
    ref = textcnn_reference(batch_idx, emb_table, params)

    assert out.shape == (BATCH, NCLS)
    # bf16 MXU inputs (f32 accumulation): tolerance loosened per review.
    assert jnp.allclose(out, ref, rtol=2e-2, atol=1e-2), (out, ref)

    print("KERNEL_OK")
</pallas_src>

<mosaic_0001>
module attributes {stable_mosaic.version = 11 : i64} {
  func.func @textcnn_kernel(%arg0: i32, %arg1: memref<128x1xi32, #tpu.memory_space<vmem>>, %arg2: memref<128x1152xbf16, #tpu.memory_space<vmem>>, %arg3: memref<1x384xf32, #tpu.memory_space<vmem>>, %arg4: memref<384x128xbf16, #tpu.memory_space<vmem>>, %arg5: memref<1x128xf32, #tpu.memory_space<vmem>>, %arg6: memref<8x128xf32, #tpu.memory_space<vmem>>) attributes {dimension_semantics = [#tpu.dimension_semantics<parallel>], iteration_bounds = array<i64: 2>, scalar_prefetch = 0 : i64, scratch_operands = 0 : i64, tpu.core_type = #tpu.core_type<tc>, window_params = [{transform_indices = @transform_0, window_bounds = array<i64: 128, 1>}, {pipeline_mode = #tpu.pipeline_mode<synchronous>, transform_indices = @transform_1, window_bounds = array<i64: 128, 1152>}, {pipeline_mode = #tpu.pipeline_mode<synchronous>, transform_indices = @transform_2, window_bounds = array<i64: 1, 384>}, {pipeline_mode = #tpu.pipeline_mode<synchronous>, transform_indices = @transform_3, window_bounds = array<i64: 384, 128>}, {pipeline_mode = #tpu.pipeline_mode<synchronous>, transform_indices = @transform_4, window_bounds = array<i64: 1, 128>}, {transform_indices = @transform_5, window_bounds = array<i64: 8, 128>}]} {
    %c0 = arith.constant 0 : index
    %c0_0 = arith.constant 0 : index
    %0 = vector.load %arg1[%c0, %c0_0] : memref<128x1xi32, #tpu.memory_space<vmem>>, vector<128x1xi32>
    %1 = tpu.iota {dimensions = array<i32: 1>} : vector<128x128xi32>
    %2 = vector.broadcast %0 : vector<128x1xi32> to vector<128x128xi32>
    %3 = arith.cmpi eq, %2, %1 : vector<128x128xi32>
    %4 = arith.extui %3 : vector<128x128xi1> to vector<128x128xi32>
    %5 = arith.sitofp %4 : vector<128x128xi32> to vector<128x128xf32>
    %6 = arith.truncf %5 : vector<128x128xf32> to vector<128x128xbf16>
    %c0_1 = arith.constant 0 : index
    %c0_2 = arith.constant 0 : index
    %7 = vector.load %arg2[%c0_1, %c0_2] : memref<128x1152xbf16, #tpu.memory_space<vmem>>, vector<128x1152xbf16>
    %cst = arith.constant dense<0.000000e+00> : vector<128x1152xf32>
    %8 = tpu.matmul %6, %7, %cst {dimension_numbers = #tpu.dot_dimension_numbers<[1], [0], [0], [1], [0, 0, 1, 1], [], []>} : vector<128x128xbf16>, vector<128x1152xbf16>, vector<128x1152xf32> -> vector<128x1152xf32>
    %9 = vector.shape_cast %8 : vector<128x1152xf32> to vector<8x16x1152xf32>
    %10 = vector.extract_strided_slice %9 {offsets = [0, 0, 0], sizes = [8, 15, 128], strides = [1, 1, 1]} : vector<8x16x1152xf32> to vector<8x15x128xf32>
    %11 = vector.extract_strided_slice %9 {offsets = [0, 1, 128], sizes = [8, 15, 128], strides = [1, 1, 1]} : vector<8x16x1152xf32> to vector<8x15x128xf32>
    %12 = arith.addf %10, %11 : vector<8x15x128xf32>
    %cst_3 = arith.constant dense<0xFF800000> : vector<8x128xf32>
    %13 = vector.multi_reduction <maximumf>, %12, %cst_3 [1] : vector<8x15x128xf32> to vector<8x128xf32>
    %14 = vector.extract_strided_slice %9 {offsets = [0, 0, 256], sizes = [8, 14, 128], strides = [1, 1, 1]} : vector<8x16x1152xf32> to vector<8x14x128xf32>
    %15 = vector.extract_strided_slice %9 {offsets = [0, 1, 384], sizes = [8, 14, 128], strides = [1, 1, 1]} : vector<8x16x1152xf32> to vector<8x14x128xf32>
    %16 = arith.addf %14, %15 : vector<8x14x128xf32>
    %17 = vector.extract_strided_slice %9 {offsets = [0, 2, 512], sizes = [8, 14, 128], strides = [1, 1, 1]} : vector<8x16x1152xf32> to vector<8x14x128xf32>
    %18 = arith.addf %16, %17 : vector<8x14x128xf32>
    %cst_4 = arith.constant dense<0xFF800000> : vector<8x128xf32>
    %19 = vector.multi_reduction <maximumf>, %18, %cst_4 [1] : vector<8x14x128xf32> to vector<8x128xf32>
    %20 = vector.extract_strided_slice %9 {offsets = [0, 0, 640], sizes = [8, 13, 128], strides = [1, 1, 1]} : vector<8x16x1152xf32> to vector<8x13x128xf32>
    %21 = vector.extract_strided_slice %9 {offsets = [0, 1, 768], sizes = [8, 13, 128], strides = [1, 1, 1]} : vector<8x16x1152xf32> to vector<8x13x128xf32>
    %22 = arith.addf %20, %21 : vector<8x13x128xf32>
    %23 = vector.extract_strided_slice %9 {offsets = [0, 2, 896], sizes = [8, 13, 128], strides = [1, 1, 1]} : vector<8x16x1152xf32> to vector<8x13x128xf32>
    %24 = arith.addf %22, %23 : vector<8x13x128xf32>
    %25 = vector.extract_strided_slice %9 {offsets = [0, 3, 1024], sizes = [8, 13, 128], strides = [1, 1, 1]} : vector<8x16x1152xf32> to vector<8x13x128xf32>
    %26 = arith.addf %24, %25 : vector<8x13x128xf32>
    %cst_5 = arith.constant dense<0xFF800000> : vector<8x128xf32>
    %27 = vector.multi_reduction <maximumf>, %26, %cst_5 [1] : vector<8x13x128xf32> to vector<8x128xf32>
    %28 = tpu.concatenate %13, %19, %27 in 1 : vector<8x128xf32>, vector<8x128xf32>, vector<8x128xf32> -> vector<8x384xf32>
    %c0_6 = arith.constant 0 : index
    %c0_7 = arith.constant 0 : index
    %29 = vector.load %arg3[%c0_6, %c0_7] : memref<1x384xf32, #tpu.memory_space<vmem>>, vector<1x384xf32>
    %30 = vector.broadcast %29 : vector<1x384xf32> to vector<8x384xf32>
    %31 = arith.addf %28, %30 : vector<8x384xf32>
    %cst_8 = arith.constant 0.000000e+00 : f32
    %32 = vector.broadcast %cst_8 : f32 to vector<8x384xf32>
    %33 = arith.maximumf %31, %32 : vector<8x384xf32>
    %34 = arith.truncf %33 : vector<8x384xf32> to vector<8x384xbf16>
    %c0_9 = arith.constant 0 : index
    %c0_10 = arith.constant 0 : index
    %35 = vector.load %arg4[%c0_9, %c0_10] : memref<384x128xbf16, #tpu.memory_space<vmem>>, vector<384x128xbf16>
    %cst_11 = arith.constant dense<0.000000e+00> : vector<8x128xf32>
    %36 = tpu.matmul %34, %35, %cst_11 {dimension_numbers = #tpu.dot_dimension_numbers<[1], [0], [0], [1], [0, 0, 1, 1], [], []>} : vector<8x384xbf16>, vector<384x128xbf16>, vector<8x128xf32> -> vector<8x128xf32>
    %c0_12 = arith.constant 0 : index
    %c0_13 = arith.constant 0 : index
    %37 = vector.load %arg5[%c0_12, %c0_13] : memref<1x128xf32, #tpu.memory_space<vmem>>, vector<1x128xf32>
    %38 = vector.broadcast %37 : vector<1x128xf32> to vector<8x128xf32>
    %39 = arith.addf %36, %38 : vector<8x128xf32>
    %c0_14 = arith.constant 0 : index
    %c0_15 = arith.constant 0 : index
    %40 = vector.load %arg6[%c0_14, %c0_15] : memref<8x128xf32, #tpu.memory_space<vmem>>, vector<8x128xf32>
    tpu.vector_store %arg6[%c0_14, %c0_15], %39 {strides = array<i32>} : memref<8x128xf32, #tpu.memory_space<vmem>>, vector<8x128xf32>,
    return
  }
  func.func @transform_0(%arg0: i32) -> (i32, i32) {
    %c0_i32 = arith.constant 0 : i32
    %c0_i32_0 = arith.constant 0 : i32
    return %arg0, %c0_i32 : i32, i32
  }
  func.func @transform_1(%arg0: i32) -> (i32, i32) {
    %c0_i32 = arith.constant 0 : i32
    %c0_i32_0 = arith.constant 0 : i32
    %c0_i32_1 = arith.constant 0 : i32
    return %c0_i32, %c0_i32_0 : i32, i32
  }
  func.func @transform_2(%arg0: i32) -> (i32, i32) {
    %c0_i32 = arith.constant 0 : i32
    %c0_i32_0 = arith.constant 0 : i32
    %c0_i32_1 = arith.constant 0 : i32
    return %c0_i32, %c0_i32_0 : i32, i32
  }
  func.func @transform_3(%arg0: i32) -> (i32, i32) {
    %c0_i32 = arith.constant 0 : i32
    %c0_i32_0 = arith.constant 0 : i32
    %c0_i32_1 = arith.constant 0 : i32
    return %c0_i32, %c0_i32_0 : i32, i32
  }
  func.func @transform_4(%arg0: i32) -> (i32, i32) {
    %c0_i32 = arith.constant 0 : i32
    %c0_i32_0 = arith.constant 0 : i32
    %c0_i32_1 = arith.constant 0 : i32
    return %c0_i32, %c0_i32_0 : i32, i32
  }
  func.func @transform_5(%arg0: i32) -> (i32, i32) {
    %c0_i32 = arith.constant 0 : i32
    %c0_i32_0 = arith.constant 0 : i32
    return %arg0, %c0_i32 : i32, i32
  }
}

</mosaic_0001>

<llo_original>
// kernel: textcnn_forward.1
$region0: #{textcnn_forward.1}
  #allocation0 [shape = 'u32[]', space=smem, size = 0x4, offset = 0x4, fixed_abs, tag = 'smem constant byte address 0x4 - core index']
  #allocation1 [shape = 'u32[144,128]{1,0:T(1,128)}', space=vmem, size = 0x12000, scoped, tag = 'internal scratch']
  %s0 = inlined_call_operand.vmem [shape: s32[256,1], index: 0, kind: input, shape index: {}]
  %s1 = inlined_call_operand.vmem [shape: bf16[128,1152], index: 1, kind: input, shape index: {}]
  %s2 = inlined_call_operand.vmem [shape: f32[1,384], index: 2, kind: input, shape index: {}]
  %s3 = inlined_call_operand.vmem [shape: bf16[384,128], index: 3, kind: input, shape index: {}]
  %s4 = inlined_call_operand.vmem [shape: f32[1,128], index: 4, kind: input, shape index: {}]
  %s5 = inlined_call_operand.vmem [shape: f32[16,128], index: 5, kind: output, shape index: {}]
  %s6 = sld [smem:[#allocation0]]
  $region53: #{textcnn_forward.1} parent=0
    _
  %s8 = ssub.s32 1, %s6
  %s9 = scalar_select 0, %s8, %s6
  loop: start=0, step=1, limit=4
  $region2: #{textcnn_forward.1} parent=0 // loop_pre_header
    _
  $region3: #{textcnn_forward.1} parent=0 // loop_header
    %s11 = sphi 0, %s15
    %p12 = scmp.ge.s32.totalorder %s11, 4
    %s21 = sphi 0, %s23
    %s24 = sphi 0, %s21
    %s25 = sphi 0, %s24
    %s41 = sphi 0, %s25
    %s45 = sphi 0, %s45
    %s47 = sphi 0, %s45
    %s48 = sphi 0, %s47
    %s62 = sphi 0, %s48
    %s66 = sphi 0, %s66
    %s68 = sphi 0, %s66
    %s69 = sphi 0, %s68
    %s83 = sphi 0, %s69
    %s87 = sphi 0, %s87
    %s89 = sphi 0, %s87
    %s90 = sphi 0, %s89
    %s104 = sphi 0, %s90
    %s108 = sphi 0, %s108
    %s110 = sphi 0, %s108
    %s111 = sphi 0, %s110
    %s125 = sphi 0, %s111
    %s131 = sphi 0, %s133
    %s134 = sphi 0, %s131
    %s135 = sphi 0, %s134
    %s151 = sphi 0, %s135
  $region4: #{textcnn_forward.1} parent=0 // loop_header_branch
    %14 = sbr.rel (%p12) target = $region8
  $region5: #{textcnn_forward.1} parent=0 // loop_body
    %s16 = ssub.s32 %s11, 1
    %s17 = ssub.s32 %s11, 2
    %s18 = sadd.s32 %s11, 1
    %s19 = ssub.s32 %s11, %s18
    %p20 = scmp.eq.s32.totalorder %s19, 0
    %s22 = sadd.s32 %s21, 1
    %s23 = scalar_select %p20, %s21, %s22
    %p26 = pneg %p20
    %p27 = scmp.eq.s32.totalorder %s11, 1
    %p28 = por %p26, %p27
    %p29 = scmp.ne.s32.totalorder %s21, %s24
    %p30 = scmp.eq.s32.totalorder %s11, 0
    %p31 = por %p29, %p30
    %p32 = scmp.ne.s32.totalorder %s21, %s24
    %p33 = scmp.eq.s32.totalorder %s16, 1
    %p34 = por %p32, %p33
    %p35 = scmp.ne.s32.totalorder %s24, %s25
    %p36 = scmp.eq.s32.totalorder %s16, 0
    %p37 = por %p35, %p36
    %p38 = scmp.ne.s32.totalorder %s24, %s25
    %p39 = scmp.eq.s32.totalorder %s17, 1
    %p40 = por %p38, %p39
    %p42 = scmp.ne.s32.totalorder %s25, %s41
    %p43 = scmp.eq.s32.totalorder %s17, 0
    %p44 = por %p42, %p43
    %s46 = sadd.s32 %s45, 1
    %p49 = scmp.eq.s32.totalorder %s11, 1
    %p50 = scmp.ne.s32.totalorder %s45, %s47
    %p51 = scmp.eq.s32.totalorder %s11, 0
    %p52 = por %p50, %p51
    %p53 = scmp.ne.s32.totalorder %s45, %s47
    %p54 = scmp.eq.s32.totalorder %s16, 1
    %p55 = por %p53, %p54
    %p56 = scmp.ne.s32.totalorder %s47, %s48
    %p57 = scmp.eq.s32.totalorder %s16, 0
    %p58 = por %p56, %p57
    %p59 = scmp.ne.s32.totalorder %s47, %s48
    %p60 = scmp.eq.s32.totalorder %s17, 1
    %p61 = por %p59, %p60
    %p63 = scmp.ne.s32.totalorder %s48, %s62
    %p64 = scmp.eq.s32.totalorder %s17, 0
    %p65 = por %p63, %p64
    %s67 = sadd.s32 %s66, 1
    %p70 = scmp.eq.s32.totalorder %s11, 1
    %p71 = scmp.ne.s32.totalorder %s66, %s68
    %p72 = scmp.eq.s32.totalorder %s11, 0
    %p73 = por %p71, %p72
    %p74 = scmp.ne.s32.totalorder %s66, %s68
    %p75 = scmp.eq.s32.totalorder %s16, 1
    %p76 = por %p74, %p75
    %p77 = scmp.ne.s32.totalorder %s68, %s69
    %p78 = scmp.eq.s32.totalorder %s16, 0
    %p79 = por %p77, %p78
    %p80 = scmp.ne.s32.totalorder %s68, %s69
    %p81 = scmp.eq.s32.totalorder %s17, 1
    %p82 = por %p80, %p81
    %p84 = scmp.ne.s32.totalorder %s69, %s83
    %p85 = scmp.eq.s32.totalorder %s17, 0
    %p86 = por %p84, %p85
    %s88 = sadd.s32 %s87, 1
    %p91 = scmp.eq.s32.totalorder %s11, 1
    %p92 = scmp.ne.s32.totalorder %s87, %s89
    %p93 = scmp.eq.s32.totalorder %s11, 0
    %p94 = por %p92, %p93
    %p95 = scmp.ne.s32.totalorder %s87, %s89
    %p96 = scmp.eq.s32.totalorder %s16, 1
    %p97 = por %p95, %p96
    %p98 = scmp.ne.s32.totalorder %s89, %s90
    %p99 = scmp.eq.s32.totalorder %s16, 0
    %p100 = por %p98, %p99
    %p101 = scmp.ne.s32.totalorder %s89, %s90
    %p102 = scmp.eq.s32.totalorder %s17, 1
    %p103 = por %p101, %p102
    %p105 = scmp.ne.s32.totalorder %s90, %s104
    %p106 = scmp.eq.s32.totalorder %s17, 0
    %p107 = por %p105, %p106
    %s109 = sadd.s32 %s108, 1
    %p112 = scmp.eq.s32.totalorder %s11, 1
    %p113 = scmp.ne.s32.totalorder %s108, %s110
    %p114 = scmp.eq.s32.totalorder %s11, 0
    %p115 = por %p113, %p114
    %p116 = scmp.ne.s32.totalorder %s108, %s110
    %p117 = scmp.eq.s32.totalorder %s16, 1
    %p118 = por %p116, %p117
    %p119 = scmp.ne.s32.totalorder %s110, %s111
    %p120 = scmp.eq.s32.totalorder %s16, 0
    %p121 = por %p119, %p120
    %p122 = scmp.ne.s32.totalorder %s110, %s111
    %p123 = scmp.eq.s32.totalorder %s17, 1
    %p124 = por %p122, %p123
    %p126 = scmp.ne.s32.totalorder %s111, %s125
    %p127 = scmp.eq.s32.totalorder %s17, 0
    %p128 = por %p126, %p127
    %s129 = ssub.s32 %s11, %s18
    %p130 = scmp.eq.s32.totalorder %s129, 0
    %s132 = sadd.s32 %s131, 1
    %s133 = scalar_select %p130, %s131, %s132
    %p136 = pneg %p130
    %p137 = scmp.eq.s32.totalorder %s11, 1
    %p138 = por %p136, %p137
    %p139 = scmp.ne.s32.totalorder %s131, %s134
    %p140 = scmp.eq.s32.totalorder %s11, 0
    %p141 = por %p139, %p140
    %p142 = scmp.ne.s32.totalorder %s131, %s134
    %p143 = scmp.eq.s32.totalorder %s16, 1
    %p144 = por %p142, %p143
    %p145 = scmp.ne.s32.totalorder %s134, %s135
    %p146 = scmp.eq.s32.totalorder %s16, 0
    %p147 = por %p145, %p146
    %p148 = scmp.ne.s32.totalorder %s134, %s135
    %p149 = scmp.eq.s32.totalorder %s17, 1
    %p150 = por %p148, %p149
    %p152 = scmp.ne.s32.totalorder %s135, %s151
    %p153 = scmp.eq.s32.totalorder %s17, 0
    %p154 = por %p152, %p153
    %p155 = scmp.le.s32.totalorder 1, %s11
    %p156 = scmp.lt.s32.totalorder %s11, 3
    %p157 = pnand %p155, %p156
    %p158 = pneg %p157
    // Predicated region
    $region9: #{textcnn_forward.1} parent=5 // pred_check
      _
    $region10: #{textcnn_forward.1} parent=5 // pred_check_branch
      %160 = sbr.rel (%p157) target = $region12
    $region11: #{textcnn_forward.1} parent=5 // pred_region
      %s161 = ssub.s32 %s11, 1
      // Predicated region
      $region13: #{textcnn_forward.1} parent=11 // pred_check
        %p162 = pneg %p58
      $region14: #{textcnn_forward.1} parent=11 // pred_check_branch
        %164 = sbr.rel (%p162) target = $region16
      $region15: #{textcnn_forward.1} parent=11 // pred_region
        _
      $region16: #{textcnn_forward.1} parent=11 // pred_fallthru
        _
      // Predicated region
      $region17: #{textcnn_forward.1} parent=11 // pred_check
        %p165 = pneg %p79
      $region18: #{textcnn_forward.1} parent=11 // pred_check_branch
        %167 = sbr.rel (%p165) target = $region20
      $region19: #{textcnn_forward.1} parent=11 // pred_region
        _
      $region20: #{textcnn_forward.1} parent=11 // pred_fallthru
        _
      // Predicated region
      $region21: #{textcnn_forward.1} parent=11 // pred_check
        %p168 = pneg %p100
      $region22: #{textcnn_forward.1} parent=11 // pred_check_branch
        %170 = sbr.rel (%p168) target = $region24
      $region23: #{textcnn_forward.1} parent=11 // pred_region
        _
      $region24: #{textcnn_forward.1} parent=11 // pred_fallthru
        _
      // Predicated region
      $region25: #{textcnn_forward.1} parent=11 // pred_check
        %p171 = pneg %p121
      $region26: #{textcnn_forward.1} parent=11 // pred_check_branch
        %173 = sbr.rel (%p171) target = $region28
      $region27: #{textcnn_forward.1} parent=11 // pred_region
        _
      $region28: #{textcnn_forward.1} parent=11 // pred_fallthru
        _
    $region12: #{textcnn_forward.1} parent=5 // pred_fallthru
      _
    %p174 = scmp.lt.s32.totalorder %s11, 2
    // Predicated region
    $region29: #{textcnn_forward.1} parent=5 // pred_check
      %p175 = pneg %p174
    $region30: #{textcnn_forward.1} parent=5 // pred_check_branch
      %177 = sbr.rel (%p175) target = $region32
    $region31: #{textcnn_forward.1} parent=5 // pred_region
      // Predicated region
      $region33: #{textcnn_forward.1} parent=31 // pred_check
        %p178 = pneg %p31
      $region34: #{textcnn_forward.1} parent=31 // pred_check_branch
        %180 = sbr.rel (%p178) target = $region36
      $region35: #{textcnn_forward.1} parent=31 // pred_region
        %s181 = smul.u32 16, %s11
        %p182 = scmp.lt.s32.totalorder %s181, 31
        %s183 = scalar_select %p182, %s181, 31
        %s184 = smul.addr %s183, 8
        %s185 = scalar_lea.vmem %s0, %s184
        %s186 = smul.u32 16, %s11
      $region36: #{textcnn_forward.1} parent=31 // pred_fallthru
        _
    $region32: #{textcnn_forward.1} parent=5 // pred_fallthru
      _
    %p187 = scmp.le.s32.totalorder 1, %s11
    %p188 = scmp.lt.s32.totalorder %s11, 3
    %p189 = pnand %p187, %p188
    %p190 = pneg %p189
    // Predicated region
    $region37: #{textcnn_forward.1} parent=5 // pred_check
      _
    $region38: #{textcnn_forward.1} parent=5 // pred_check_branch
      %192 = sbr.rel (%p189) target = $region40
    $region39: #{textcnn_forward.1} parent=5 // pred_region
      %s193 = ssub.s32 %s11, 1
      %s194 = smul.u32 16, %s16
      %p195 = scmp.lt.s32.totalorder %s194, 31
      %s196 = scalar_select %p195, %s194, 31
      %s197 = smul.addr %s196, 8
      %s198 = scalar_lea.vmem %s0, %s197
      %p199 = pneg %p37
      %p200 = pneg %p34
      %p201 = pneg %p58
      %p202 = pneg %p55
      %p203 = pneg %p79
      %p204 = pneg %p76
      %p205 = pneg %p100
      %p206 = pneg %p97
      %p207 = pneg %p121
      %p208 = pneg %p118
      %p209 = pneg %p147
      %p210 = pneg %p144
      %p211 = scmp.lt.s32.totalorder %s16, 1
      %s212 = scalar_select %p211, %s16, 1
      %s213 = smul.addr %s212, 8
      %s214 = scalar_lea.vmem %s5, %s213
      %s215 = smul.u32 16, %s16
      %p216 = scmp.lt.s32.totalorder %s215, 31
      %s217 = scalar_select %p216, %s215, 31
      %s218 = smul.addr %s217, 8
      %s219 = scalar_lea.vmem %s0, %s218
      %s220 = smul.u32 16, %s16
      %p221 = scmp.lt.s32.totalorder %s16, 1
      %s222 = scalar_select %p221, %s16, 1
      %s223 = smul.addr %s222, 8
      %s224 = scalar_lea.vmem %s5, %s223
      %v226 = vld [vmem:[%s219] sm:$0xff]
      %v227 = vld [vmem:[%s219 + $0x8] sm:$0xff]
      %v228 = vld [vmem:[%s219 + $0x10] sm:$0xff]
      %v229 = vld [vmem:[%s219 + $0x18] sm:$0xff]
      %v230 = vld [vmem:[%s219 + $0x20] sm:$0xff]
      %v231 = vld [vmem:[%s219 + $0x28] sm:$0xff]
      %v232 = vld [vmem:[%s219 + $0x30] sm:$0xff]
      %v233 = vld [vmem:[%s219 + $0x38] sm:$0xff]
      %v234 = vld [vmem:[%s219 + $0x40] sm:$0xff]
      %v235 = vld [vmem:[%s219 + $0x48] sm:$0xff]
      %v236 = vld [vmem:[%s219 + $0x50] sm:$0xff]
      %v237 = vld [vmem:[%s219 + $0x58] sm:$0xff]
      %v238 = vld [vmem:[%s219 + $0x60] sm:$0xff]
      %v239 = vld [vmem:[%s219 + $0x68] sm:$0xff]
      %v240 = vld [vmem:[%s219 + $0x70] sm:$0xff]
      %v241 = vld [vmem:[%s219 + $0x78] sm:$0xff]
      %v242 = vlaneseq
      %v243 = vand.u32 %v242, 127
      %244 = vset.pattern.permute.xlu0 0
      %245 = vperm.xlu0 %244, %v226
      %v246 = vpop.permute.xlu0 %245
      %247 = vset.pattern.permute.xlu0 0
      %248 = vperm.xlu0 %247, %v227
      %v249 = vpop.permute.xlu0 %248
      %250 = vset.pattern.permute.xlu0 0
      %251 = vperm.xlu0 %250, %v228
      %v252 = vpop.permute.xlu0 %251
      %253 = vset.pattern.permute.xlu0 0
      %254 = vperm.xlu0 %253, %v229
      %v255 = vpop.permute.xlu0 %254
      %256 = vset.pattern.permute.xlu0 0
      %257 = vperm.xlu0 %256, %v230
      %v258 = vpop.permute.xlu0 %257
      %259 = vset.pattern.permute.xlu0 0
      %260 = vperm.xlu0 %259, %v231
      %v261 = vpop.permute.xlu0 %260
      %262 = vset.pattern.permute.xlu0 0
      %263 = vperm.xlu0 %262, %v232
      %v264 = vpop.permute.xlu0 %263
      %265 = vset.pattern.permute.xlu0 0
      %266 = vperm.xlu0 %265, %v233
      %v267 = vpop.permute.xlu0 %266
      %268 = vset.pattern.permute.xlu0 0
      %269 = vperm.xlu0 %268, %v234
      %v270 = vpop.permute.xlu0 %269
      %271 = vset.pattern.permute.xlu0 0
      %272 = vperm.xlu0 %271, %v235
      %v273 = vpop.permute.xlu0 %272
      %274 = vset.pattern.permute.xlu0 0
      %275 = vperm.xlu0 %274, %v236
      %v276 = vpop.permute.xlu0 %275
      %277 = vset.pattern.permute.xlu0 0
      %278 = vperm.xlu0 %277, %v237
      %v279 = vpop.permute.xlu0 %278
      %280 = vset.pattern.permute.xlu0 0
      %281 = vperm.xlu0 %280, %v238
      %v282 = vpop.permute.xlu0 %281
      %283 = vset.pattern.permute.xlu0 0
      %284 = vperm.xlu0 %283, %v239
      %v285 = vpop.permute.xlu0 %284
      %286 = vset.pattern.permute.xlu0 0
      %287 = vperm.xlu0 %286, %v240
      %v288 = vpop.permute.xlu0 %287
      %289 = vset.pattern.permute.xlu0 0
      %290 = vperm.xlu0 %289, %v241
      %v291 = vpop.permute.xlu0 %290
      %vm292 = vcmp.eq.s32.totalorder %v246, %v243
      %vm293 = vcmp.eq.s32.totalorder %v249, %v243
      %vm294 = vcmp.eq.s32.totalorder %v252, %v243
      %vm295 = vcmp.eq.s32.totalorder %v255, %v243
      %vm296 = vcmp.eq.s32.totalorder %v258, %v243
      %vm297 = vcmp.eq.s32.totalorder %v261, %v243
      %vm298 = vcmp.eq.s32.totalorder %v264, %v243
      %vm299 = vcmp.eq.s32.totalorder %v267, %v243
      %vm300 = vcmp.eq.s32.totalorder %v270, %v243
      %vm301 = vcmp.eq.s32.totalorder %v273, %v243
      %vm302 = vcmp.eq.s32.totalorder %v276, %v243
      %vm303 = vcmp.eq.s32.totalorder %v279, %v243
      %vm304 = vcmp.eq.s32.totalorder %v282, %v243
      %vm305 = vcmp.eq.s32.totalorder %v285, %v243
      %vm306 = vcmp.eq.s32.totalorder %v288, %v243
      %vm307 = vcmp.eq.s32.totalorder %v291, %v243
      %v308 = vsel %vm292, 1, 0
      %v309 = vsel %vm293, 1, 0
      %v310 = vsel %vm294, 1, 0
      %v311 = vsel %vm295, 1, 0
      %v312 = vsel %vm296, 1, 0
      %v313 = vsel %vm297, 1, 0
      %v314 = vsel %vm298, 1, 0
      %v315 = vsel %vm299, 1, 0
      %v316 = vsel %vm300, 1, 0
      %v317 = vsel %vm301, 1, 0
      %v318 = vsel %vm302, 1, 0
      %v319 = vsel %vm303, 1, 0
      %v320 = vsel %vm304, 1, 0
      %v321 = vsel %vm305, 1, 0
      %v322 = vsel %vm306, 1, 0
      %v323 = vsel %vm307, 1, 0
      %v324 = vcvt.s32.f32 %v308
      %v325 = vcvt.s32.f32 %v309
      %v326 = vcvt.s32.f32 %v310
      %v327 = vcvt.s32.f32 %v311
      %v328 = vcvt.s32.f32 %v312
      %v329 = vcvt.s32.f32 %v313
      %v330 = vcvt.s32.f32 %v314
      %v331 = vcvt.s32.f32 %v315
      %v332 = vcvt.s32.f32 %v316
      %v333 = vcvt.s32.f32 %v317
      %v334 = vcvt.s32.f32 %v318
      %v335 = vcvt.s32.f32 %v319
      %v336 = vcvt.s32.f32 %v320
      %v337 = vcvt.s32.f32 %v321
      %v338 = vcvt.s32.f32 %v322
      %v339 = vcvt.s32.f32 %v323
      %v340 = vpack.c.bf16 %v325, %v324
      %v341 = vpack.c.bf16 %v327, %v326
      %v342 = vpack.c.bf16 %v329, %v328
      %v343 = vpack.c.bf16 %v331, %v330
      %v344 = vpack.c.bf16 %v333, %v332
      %v345 = vpack.c.bf16 %v335, %v334
      %v346 = vpack.c.bf16 %v337, %v336
      %v347 = vpack.c.bf16 %v339, %v338
      %v348 = vld [vmem:[%s1] sm:$0xff]
      %v349 = vld [vmem:[%s1 + $0x8] sm:$0xff]
      %v350 = vld [vmem:[%s1 + $0x10] sm:$0xff]
      %v351 = vld [vmem:[%s1 + $0x18] sm:$0xff]
      %v352 = vld [vmem:[%s1 + $0x20] sm:$0xf]
      %v353 = vld [vmem:[%s1 + $0x24] sm:$0xff]
      %v354 = vld [vmem:[%s1 + $0x2c] sm:$0xff]
      %v355 = vld [vmem:[%s1 + $0x34] sm:$0xff]
      %v356 = vld [vmem:[%s1 + $0x3c] sm:$0xff]
      %v357 = vld [vmem:[%s1 + $0x44] sm:$0xf]
      %v358 = vld [vmem:[%s1 + $0x48] sm:$0xff]
      %v359 = vld [vmem:[%s1 + $0x50] sm:$0xff]
      %v360 = vld [vmem:[%s1 + $0x58] sm:$0xff]
      %v361 = vld [vmem:[%s1 + $0x60] sm:$0xff]
      %v362 = vld [vmem:[%s1 + $0x68] sm:$0xf]
      %v363 = vld [vmem:[%s1 + $0x6c] sm:$0xff]
      %v364 = vld [vmem:[%s1 + $0x74] sm:$0xff]
      %v365 = vld [vmem:[%s1 + $0x7c] sm:$0xff]
      %v366 = vld [vmem:[%s1 + $0x84] sm:$0xff]
      %v367 = vld [vmem:[%s1 + $0x8c] sm:$0xf]
      %v368 = vld [vmem:[%s1 + $0x90] sm:$0xff]
      %v369 = vld [vmem:[%s1 + $0x98] sm:$0xff]
      %v370 = vld [vmem:[%s1 + $0xa0] sm:$0xff]
      %v371 = vld [vmem:[%s1 + $0xa8] sm:$0xff]
      %v372 = vld [vmem:[%s1 + $0xb0] sm:$0xf]
      %v373 = vld [vmem:[%s1 + $0xb4] sm:$0xff]
      %v374 = vld [vmem:[%s1 + $0xbc] sm:$0xff]
      %v375 = vld [vmem:[%s1 + $0xc4] sm:$0xff]
      %v376 = vld [vmem:[%s1 + $0xcc] sm:$0xff]
      %v377 = vld [vmem:[%s1 + $0xd4] sm:$0xf]
      %v378 = vld [vmem:[%s1 + $0xd8] sm:$0xff]
      %v379 = vld [vmem:[%s1 + $0xe0] sm:$0xff]
      %v380 = vld [vmem:[%s1 + $0xe8] sm:$0xff]
      %v381 = vld [vmem:[%s1 + $0xf0] sm:$0xff]
      %v382 = vld [vmem:[%s1 + $0xf8] sm:$0xf]
      %v383 = vld [vmem:[%s1 + $0xfc] sm:$0xff]
      %v384 = vld [vmem:[%s1 + $0x104] sm:$0xff]
      %v385 = vld [vmem:[%s1 + $0x10c] sm:$0xff]
      %v386 = vld [vmem:[%s1 + $0x114] sm:$0xff]
      %v387 = vld [vmem:[%s1 + $0x11c] sm:$0xf]
      %v388 = vld [vmem:[%s1 + $0x120] sm:$0xff]
      %v389 = vld [vmem:[%s1 + $0x128] sm:$0xff]
      %v390 = vld [vmem:[%s1 + $0x130] sm:$0xff]
      %v391 = vld [vmem:[%s1 + $0x138] sm:$0xff]
      %v392 = vld [vmem:[%s1 + $0x140] sm:$0xf]
      %v393 = vld [vmem:[%s1 + $0x144] sm:$0xff]
      %v394 = vld [vmem:[%s1 + $0x14c] sm:$0xff]
      %v395 = vld [vmem:[%s1 + $0x154] sm:$0xff]
      %v396 = vld [vmem:[%s1 + $0x15c] sm:$0xff]
      %v397 = vld [vmem:[%s1 + $0x164] sm:$0xf]
      %v398 = vld [vmem:[%s1 + $0x168] sm:$0xff]
      %v399 = vld [vmem:[%s1 + $0x170] sm:$0xff]
      %v400 = vld [vmem:[%s1 + $0x178] sm:$0xff]
      %v401 = vld [vmem:[%s1 + $0x180] sm:$0xff]
      %v402 = vld [vmem:[%s1 + $0x188] sm:$0xf]
      %v403 = vld [vmem:[%s1 + $0x18c] sm:$0xff]
      %v404 = vld [vmem:[%s1 + $0x194] sm:$0xff]
      %v405 = vld [vmem:[%s1 + $0x19c] sm:$0xff]
      %v406 = vld [vmem:[%s1 + $0x1a4] sm:$0xff]
      %v407 = vld [vmem:[%s1 + $0x1ac] sm:$0xf]
      %v408 = vld [vmem:[%s1 + $0x1b0] sm:$0xff]
      %v409 = vld [vmem:[%s1 + $0x1b8] sm:$0xff]
      %v410 = vld [vmem:[%s1 + $0x1c0] sm:$0xff]
      %v411 = vld [vmem:[%s1 + $0x1c8] sm:$0xff]
      %v412 = vld [vmem:[%s1 + $0x1d0] sm:$0xf]
      %v413 = vld [vmem:[%s1 + $0x1d4] sm:$0xff]
      %v414 = vld [vmem:[%s1 + $0x1dc] sm:$0xff]
      %v415 = vld [vmem:[%s1 + $0x1e4] sm:$0xff]
      %v416 = vld [vmem:[%s1 + $0x1ec] sm:$0xff]
      %v417 = vld [vmem:[%s1 + $0x1f4] sm:$0xf]
      %v418 = vld [vmem:[%s1 + $0x1f8] sm:$0xff]
      %v419 = vld [vmem:[%s1 + $0x200] sm:$0xff]
      %v420 = vld [vmem:[%s1 + $0x208] sm:$0xff]
      %v421 = vld [vmem:[%s1 + $0x210] sm:$0xff]
      %v422 = vld [vmem:[%s1 + $0x218] sm:$0xf]
      %v423 = vld [vmem:[%s1 + $0x21c] sm:$0xff]
      %v424 = vld [vmem:[%s1 + $0x224] sm:$0xff]
      %v425 = vld [vmem:[%s1 + $0x22c] sm:$0xff]
      %v426 = vld [vmem:[%s1 + $0x234] sm:$0xff]
      %v427 = vld [vmem:[%s1 + $0x23c] sm:$0xf]
      %v508 = vunpack.c.l.b16 %v348
      %v509 = vunpack.c.h.b16 %v348
      %v510 = vunpack.c.l.b16 %v349
      %v511 = vunpack.c.h.b16 %v349
      %v512 = vunpack.c.l.b16 %v350
      %v513 = vunpack.c.h.b16 %v350
      %v514 = vunpack.c.l.b16 %v351
      %v515 = vunpack.c.h.b16 %v351
      %v516 = vunpack.c.l.b16 %v352
      %v517 = vunpack.c.l.b16 %v353
      %v518 = vunpack.c.h.b16 %v353
      %v519 = vunpack.c.l.b16 %v354
      %v520 = vunpack.c.h.b16 %v354
      %v521 = vunpack.c.l.b16 %v355
      %v522 = vunpack.c.h.b16 %v355
      %v523 = vunpack.c.l.b16 %v356
      %v524 = vunpack.c.h.b16 %v356
      %v525 = vunpack.c.l.b16 %v357
      %v526 = vunpack.c.l.b16 %v358
      %v527 = vunpack.c.h.b16 %v358
      %v528 = vunpack.c.l.b16 %v359
      %v529 = vunpack.c.h.b16 %v359
      %v530 = vunpack.c.l.b16 %v360
      %v531 = vunpack.c.h.b16 %v360
      %v532 = vunpack.c.l.b16 %v361
      %v533 = vunpack.c.h.b16 %v361
      %v534 = vunpack.c.l.b16 %v362
      %v535 = vunpack.c.l.b16 %v363
      %v536 = vunpack.c.h.b16 %v363
      %v537 = vunpack.c.l.b16 %v364
      %v538 = vunpack.c.h.b16 %v364
      %v539 = vunpack.c.l.b16 %v365
      %v540 = vunpack.c.h.b16 %v365
      %v541 = vunpack.c.l.b16 %v366
      %v542 = vunpack.c.h.b16 %v366
      %v543 = vunpack.c.l.b16 %v367
      %v544 = vunpack.c.l.b16 %v368
      %v545 = vunpack.c.h.b16 %v368
      %v546 = vunpack.c.l.b16 %v369
      %v547 = vunpack.c.h.b16 %v369
      %v548 = vunpack.c.l.b16 %v370
      %v549 = vunpack.c.h.b16 %v370
      %v550 = vunpack.c.l.b16 %v371
      %v551 = vunpack.c.h.b16 %v371
      %v552 = vunpack.c.l.b16 %v372
      %v553 = vunpack.c.l.b16 %v373
      %v554 = vunpack.c.h.b16 %v373
      %v555 = vunpack.c.l.b16 %v374
      %v556 = vunpack.c.h.b16 %v374
      %v557 = vunpack.c.l.b16 %v375
      %v558 = vunpack.c.h.b16 %v375
      %v559 = vunpack.c.l.b16 %v376
      %v560 = vunpack.c.h.b16 %v376
      %v561 = vunpack.c.l.b16 %v377
      %v562 = vunpack.c.l.b16 %v378
      %v563 = vunpack.c.h.b16 %v378
      %v564 = vunpack.c.l.b16 %v379
      %v565 = vunpack.c.h.b16 %v379
      %v566 = vunpack.c.l.b16 %v380
      %v567 = vunpack.c.h.b16 %v380
      %v568 = vunpack.c.l.b16 %v381
      %v569 = vunpack.c.h.b16 %v381
      %v570 = vunpack.c.l.b16 %v382
      %v571 = vunpack.c.l.b16 %v383
      %v572 = vunpack.c.h.b16 %v383
      %v573 = vunpack.c.l.b16 %v384
      %v574 = vunpack.c.h.b16 %v384
      %v575 = vunpack.c.l.b16 %v385
      %v576 = vunpack.c.h.b16 %v385
      %v577 = vunpack.c.l.b16 %v386
      %v578 = vunpack.c.h.b16 %v386
      %v579 = vunpack.c.l.b16 %v387
      %v580 = vunpack.c.l.b16 %v388
      %v581 = vunpack.c.h.b16 %v388
      %v582 = vunpack.c.l.b16 %v389
      %v583 = vunpack.c.h.b16 %v389
      %v584 = vunpack.c.l.b16 %v390
      %v585 = vunpack.c.h.b16 %v390
      %v586 = vunpack.c.l.b16 %v391
      %v587 = vunpack.c.h.b16 %v391
      %v588 = vunpack.c.l.b16 %v392
      %v589 = vunpack.c.l.b16 %v393
      %v590 = vunpack.c.h.b16 %v393
      %v591 = vunpack.c.l.b16 %v394
      %v592 = vunpack.c.h.b16 %v394
      %v593 = vunpack.c.l.b16 %v395
      %v594 = vunpack.c.h.b16 %v395
      %v595 = vunpack.c.l.b16 %v396
      %v596 = vunpack.c.h.b16 %v396
      %v597 = vunpack.c.l.b16 %v397
      %v598 = vunpack.c.l.b16 %v398
      %v599 = vunpack.c.h.b16 %v398
      %v600 = vunpack.c.l.b16 %v399
      %v601 = vunpack.c.h.b16 %v399
      %v602 = vunpack.c.l.b16 %v400
      %v603 = vunpack.c.h.b16 %v400
      %v604 = vunpack.c.l.b16 %v401
      %v605 = vunpack.c.h.b16 %v401
      %v606 = vunpack.c.l.b16 %v402
      %v607 = vunpack.c.l.b16 %v403
      %v608 = vunpack.c.h.b16 %v403
      %v609 = vunpack.c.l.b16 %v404
      %v610 = vunpack.c.h.b16 %v404
      %v611 = vunpack.c.l.b16 %v405
      %v612 = vunpack.c.h.b16 %v405
      %v613 = vunpack.c.l.b16 %v406
      %v614 = vunpack.c.h.b16 %v406
      %v615 = vunpack.c.l.b16 %v407
      %v616 = vunpack.c.l.b16 %v408
      %v617 = vunpack.c.h.b16 %v408
      %v618 = vunpack.c.l.b16 %v409
      %v619 = vunpack.c.h.b16 %v409
      %v620 = vunpack.c.l.b16 %v410
      %v621 = vunpack.c.h.b16 %v410
      %v622 = vunpack.c.l.b16 %v411
      %v623 = vunpack.c.h.b16 %v411
      %v624 = vunpack.c.l.b16 %v412
      %v625 = vunpack.c.l.b16 %v413
      %v626 = vunpack.c.h.b16 %v413
      %v627 = vunpack.c.l.b16 %v414
      %v628 = vunpack.c.h.b16 %v414
      %v629 = vunpack.c.l.b16 %v415
      %v630 = vunpack.c.h.b16 %v415
      %v631 = vunpack.c.l.b16 %v416
      %v632 = vunpack.c.h.b16 %v416
      %v633 = vunpack.c.l.b16 %v417
      %v634 = vunpack.c.l.b16 %v418
      %v635 = vunpack.c.h.b16 %v418
      %v636 = vunpack.c.l.b16 %v419
      %v637 = vunpack.c.h.b16 %v419
      %v638 = vunpack.c.l.b16 %v420
      %v639 = vunpack.c.h.b16 %v420
      %v640 = vunpack.c.l.b16 %v421
      %v641 = vunpack.c.h.b16 %v421
      %v642 = vunpack.c.l.b16 %v422
      %v643 = vunpack.c.l.b16 %v423
      %v644 = vunpack.c.h.b16 %v423
      %v645 = vunpack.c.l.b16 %v424
      %v646 = vunpack.c.h.b16 %v424
      %v647 = vunpack.c.l.b16 %v425
      %v648 = vunpack.c.h.b16 %v425
      %v649 = vunpack.c.l.b16 %v426
      %v650 = vunpack.c.h.b16 %v426
      %v651 = vunpack.c.l.b16 %v427
      %v652 = vpack.c.b16 %v517, %v508
      %v653 = vpack.c.b16 %v518, %v509
      %v654 = vpack.c.b16 %v519, %v510
      %v655 = vpack.c.b16 %v520, %v511
      %v656 = vpack.c.b16 %v521, %v512
      %v657 = vpack.c.b16 %v522, %v513
      %v658 = vpack.c.b16 %v523, %v514
      %v659 = vpack.c.b16 %v524, %v515
      %v660 = vpack.c.b16 %v525, %v516
      %v661 = vpack.c.b16 %v535, %v526
      %v662 = vpack.c.b16 %v536, %v527
      %v663 = vpack.c.b16 %v537, %v528
      %v664 = vpack.c.b16 %v538, %v529
      %v665 = vpack.c.b16 %v539, %v530
      %v666 = vpack.c.b16 %v540, %v531
      %v667 = vpack.c.b16 %v541, %v532
      %v668 = vpack.c.b16 %v542, %v533
      %v669 = vpack.c.b16 %v543, %v534
      %v670 = vpack.c.b16 %v553, %v544
      %v671 = vpack.c.b16 %v554, %v545
      %v672 = vpack.c.b16 %v555, %v546
      %v673 = vpack.c.b16 %v556, %v547
      %v674 = vpack.c.b16 %v557, %v548
      %v675 = vpack.c.b16 %v558, %v549
      %v676 = vpack.c.b16 %v559, %v550
      %v677 = vpack.c.b16 %v560, %v551
      %v678 = vpack.c.b16 %v561, %v552
      %v679 = vpack.c.b16 %v571, %v562
      %v680 = vpack.c.b16 %v572, %v563
      %v681 = vpack.c.b16 %v573, %v564
      %v682 = vpack.c.b16 %v574, %v565
      %v683 = vpack.c.b16 %v575, %v566
      %v684 = vpack.c.b16 %v576, %v567
      %v685 = vpack.c.b16 %v577, %v568
      %v686 = vpack.c.b16 %v578, %v569
      %v687 = vpack.c.b16 %v579, %v570
      %v688 = vpack.c.b16 %v589, %v580
      %v689 = vpack.c.b16 %v590, %v581
      %v690 = vpack.c.b16 %v591, %v582
      %v691 = vpack.c.b16 %v592, %v583
      %v692 = vpack.c.b16 %v593, %v584
      %v693 = vpack.c.b16 %v594, %v585
      %v694 = vpack.c.b16 %v595, %v586
      %v695 = vpack.c.b16 %v596, %v587
      %v696 = vpack.c.b16 %v597, %v588
      %v697 = vpack.c.b16 %v607, %v598
      %v698 = vpack.c.b16 %v608, %v599
      %v699 = vpack.c.b16 %v609, %v600
      %v700 = vpack.c.b16 %v610, %v601
      %v701 = vpack.c.b16 %v611, %v602
      %v702 = vpack.c.b16 %v612, %v603
      %v703 = vpack.c.b16 %v613, %v604
      %v704 = vpack.c.b16 %v614, %v605
      %v705 = vpack.c.b16 %v615, %v606
      %v706 = vpack.c.b16 %v625, %v616
      %v707 = vpack.c.b16 %v626, %v617
      %v708 = vpack.c.b16 %v627, %v618
      %v709 = vpack.c.b16 %v628, %v619
      %v710 = vpack.c.b16 %v629, %v620
      %v711 = vpack.c.b16 %v630, %v621
      %v712 = vpack.c.b16 %v631, %v622
      %v713 = vpack.c.b16 %v632, %v623
      %v714 = vpack.c.b16 %v633, %v624
      %v715 = vpack.c.b16 %v643, %v634
      %v716 = vpack.c.b16 %v644, %v635
      %v717 = vpack.c.b16 %v645, %v636
      %v718 = vpack.c.b16 %v646, %v637
      %v719 = vpack.c.b16 %v647, %v638
      %v720 = vpack.c.b16 %v648, %v639
      %v721 = vpack.c.b16 %v649, %v640
      %v722 = vpack.c.b16 %v650, %v641
      %v723 = vpack.c.b16 %v651, %v642
      %796 = vmatprep.subr.bf16.mxu0 %v653
      %797 = vmatpush1.bf16.msra.mxu0 %v652
      %798 = vmatprep.subr.bf16.mxu0 %v662
      %799 = vmatpush1.bf16.msra.mxu0 %v661
      %800 = vmatprep.subr.bf16.mxu0 %v671
      %801 = vmatpush1.bf16.msra.mxu0 %v670
      %802 = vmatprep.subr.bf16.mxu0 %v680
      %803 = vmatpush1.bf16.msra.mxu0 %v679
      %804 = vmatprep.subr.bf16.mxu0 %v689
      %805 = vmatpush1.bf16.msra.mxu0 %v688
      %806 = vmatprep.subr.bf16.mxu0 %v698
      %807 = vmatpush1.bf16.msra.mxu0 %v697
      %808 = vmatprep.subr.bf16.mxu0 %v707
      %809 = vmatpush1.bf16.msra.mxu0 %v706
      %810 = vmatprep.subr.bf16.mxu0 %v716
      %811 = vmatpush1.bf16.msra.mxu0 %v715
      %812 = vmatprep.subr.bf16.mxu0 0
      %813 = vmatpush1.bf16.msra.mxu0 0
      %814 = vmatprep.subr.bf16.mxu0 0
      %815 = vmatpush1.bf16.msra.mxu0 0
      %816 = vmatprep.subr.bf16.mxu0 0
      %817 = vmatpush1.bf16.msra.mxu0 0
      %818 = vmatprep.subr.bf16.mxu0 0
      %819 = vmatpush1.bf16.msra.mxu0 0
      %820 = vmatprep.subr.bf16.mxu0 0
      %821 = vmatpush1.bf16.msra.mxu0 0
      %822 = vmatprep.subr.bf16.mxu0 0
      %823 = vmatpush1.bf16.msra.mxu0 0
      %824 = vmatprep.subr.bf16.mxu0 0
      %825 = vmatpush1.bf16.msra.mxu0 0
      %826 = vmatprep.subr.bf16.mxu0 0
      %827 = vmatpush1.bf16.msra.mxu0 0
      %828 = vmatprep.mubr.bf16.mxu0 0
      %829 = vmatmul.mubr.bf16.gmra.mrb[0].mxu0 %v340
      %v830 = vpop.f32.mrb[0].mxu0
      %v831 = vadd.f32 0.0, %v830
      %v832 = vpop.f32.mrb[0].mxu0
      %v833 = vadd.f32 0.0, %v832
      %v834 = vpop.f32.mrb[0].mxu0
      %v835 = vadd.f32 0.0, %v834
      %v836 = vpop.f32.mrb[0].mxu0
      %v837 = vadd.f32 0.0, %v836
      %838 = vmatprep.mubr.bf16.mxu0 0
      %839 = vmatmul.mubr.bf16.gmra.mrb[0].mxu0 %v341
      %v840 = vpop.f32.mrb[0].mxu0
      %v841 = vadd.f32 0.0, %v840
      %v842 = vpop.f32.mrb[0].mxu0
      %v843 = vadd.f32 0.0, %v842
      %v844 = vpop.f32.mrb[0].mxu0
      %v845 = vadd.f32 0.0, %v844
      %v846 = vpop.f32.mrb[0].mxu0
      %v847 = vadd.f32 0.0, %v846
      %848 = vmatprep.mubr.bf16.mxu0 0
      %849 = vmatmul.mubr.bf16.gmra.mrb[0].mxu0 %v342
      %v850 = vpop.f32.mrb[0].mxu0
      %v851 = vadd.f32 0.0, %v850
      %v852 = vpop.f32.mrb[0].mxu0
      %v853 = vadd.f32 0.0, %v852
      %v854 = vpop.f32.mrb[0].mxu0
      %v855 = vadd.f32 0.0, %v854
      %v856 = vpop.f32.mrb[0].mxu0
      %v857 = vadd.f32 0.0, %v856
      %858 = vmatprep.mubr.bf16.mxu0 0
      %859 = vmatmul.mubr.bf16.gmra.mrb[0].mxu0 %v343
      %v860 = vpop.f32.mrb[0].mxu0
      %v861 = vadd.f32 0.0, %v860
      %v862 = vpop.f32.mrb[0].mxu0
      %v863 = vadd.f32 0.0, %v862
      %v864 = vpop.f32.mrb[0].mxu0
      %v865 = vadd.f32 0.0, %v864
      %v866 = vpop.f32.mrb[0].mxu0
      %v867 = vadd.f32 0.0, %v866
      %868 = vmatprep.mubr.bf16.mxu0 0
      %869 = vmatmul.mubr.bf16.gmra.mrb[0].mxu0 %v344
      %v870 = vpop.f32.mrb[0].mxu0
      %v871 = vadd.f32 0.0, %v870
      %v872 = vpop.f32.mrb[0].mxu0
      %v873 = vadd.f32 0.0, %v872
      %v874 = vpop.f32.mrb[0].mxu0
      %v875 = vadd.f32 0.0, %v874
      %v876 = vpop.f32.mrb[0].mxu0
      %v877 = vadd.f32 0.0, %v876
      %878 = vmatprep.mubr.bf16.mxu0 0
      %879 = vmatmul.mubr.bf16.gmra.mrb[0].mxu0 %v345
      %v880 = vpop.f32.mrb[0].mxu0
      %v881 = vadd.f32 0.0, %v880
      %v882 = vpop.f32.mrb[0].mxu0
      %v883 = vadd.f32 0.0, %v882
      %v884 = vpop.f32.mrb[0].mxu0
      %v885 = vadd.f32 0.0, %v884
      %v886 = vpop.f32.mrb[0].mxu0
      %v887 = vadd.f32 0.0, %v886
      %888 = vmatprep.mubr.bf16.mxu0 0
      %889 = vmatmul.mubr.bf16.gmra.mrb[0].mxu0 %v346
      %v890 = vpop.f32.mrb[0].mxu0
      %v891 = vadd.f32 0.0, %v890
      %v892 = vpop.f32.mrb[0].mxu0
      %v893 = vadd.f32 0.0, %v892
      %v894 = vpop.f32.mrb[0].mxu0
      %v895 = vadd.f32 0.0, %v894
      %v896 = vpop.f32.mrb[0].mxu0
      %v897 = vadd.f32 0.0, %v896
      %898 = vmatprep.mubr.bf16.mxu0 0
      %899 = vmatmul.mubr.bf16.gmra.mrb[0].mxu0 %v347
      %v900 = vpop.f32.mrb[0].mxu0
      %v901 = vadd.f32 0.0, %v900
      %v902 = vpop.f32.mrb[0].mxu0
      %v903 = vadd.f32 0.0, %v902
      %v904 = vpop.f32.mrb[0].mxu0
      %v905 = vadd.f32 0.0, %v904
      %v906 = vpop.f32.mrb[0].mxu0
      %v907 = vadd.f32 0.0, %v906
      %908 = vdwg.mxu0
      %909 = vmatprep.subr.bf16.mxu0 %v655
      %910 = vmatpush1.bf16.msra.mxu0 %v654
      %911 = vmatprep.subr.bf16.mxu0 %v664
      %912 = vmatpush1.bf16.msra.mxu0 %v663
      %913 = vmatprep.subr.bf16.mxu0 %v673
      %914 = vmatpush1.bf16.msra.mxu0 %v672
      %915 = vmatprep.subr.bf16.mxu0 %v682
      %916 = vmatpush1.bf16.msra.mxu0 %v681
      %917 = vmatprep.subr.bf16.mxu0 %v691
      %918 = vmatpush1.bf16.msra.mxu0 %v690
      %919 = vmatprep.subr.bf16.mxu0 %v700
      %920 = vmatpush1.bf16.msra.mxu0 %v699
      %921 = vmatprep.subr.bf16.mxu0 %v709
      %922 = vmatpush1.bf16.msra.mxu0 %v708
      %923 = vmatprep.subr.bf16.mxu0 %v718
      %924 = vmatpush1.bf16.msra.mxu0 %v717
      %925 = vmatprep.subr.bf16.mxu0 0
      %926 = vmatpush1.bf16.msra.mxu0 0
      %927 = vmatprep.subr.bf16.mxu0 0
      %928 = vmatpush1.bf16.msra.mxu0 0
      %929 = vmatprep.subr.bf16.mxu0 0
      %930 = vmatpush1.bf16.msra.mxu0 0
      %931 = vmatprep.subr.bf16.mxu0 0
      %932 = vmatpush1.bf16.msra.mxu0 0
      %933 = vmatprep.subr.bf16.mxu0 0
      %934 = vmatpush1.bf16.msra.mxu0 0
      %935 = vmatprep.subr.bf16.mxu0 0
      %936 = vmatpush1.bf16.msra.mxu0 0
      %937 = vmatprep.subr.bf16.mxu0 0
      %938 = vmatpush1.bf16.msra.mxu0 0
      %939 = vmatprep.subr.bf16.mxu0 0
      %940 = vmatpush1.bf16.msra.mxu0 0
      %941 = vmatprep.mubr.bf16.mxu0 0
      %942 = vmatmul.mubr.bf16.gmra.mrb[0].mxu0 %v340
      %v943 = vpop.f32.mrb[0].mxu0
      %v944 = vadd.f32 0.0, %v943
      %v945 = vpop.f32.mrb[0].mxu0
      %v946 = vadd.f32 0.0, %v945
      %v947 = vpop.f32.mrb[0].mxu0
      %v948 = vadd.f32 0.0, %v947
      %v949 = vpop.f32.mrb[0].mxu0
      %v950 = vadd.f32 0.0, %v949
      %951 = vmatprep.mubr.bf16.mxu0 0
      %952 = vmatmul.mubr.bf16.gmra.mrb[0].mxu0 %v341
      %v953 = vpop.f32.mrb[0].mxu0
      %v954 = vadd.f32 0.0, %v953
      %v955 = vpop.f32.mrb[0].mxu0
      %v956 = vadd.f32 0.0, %v955
      %v957 = vpop.f32.mrb[0].mxu0
      %v958 = vadd.f32 0.0, %v957
      %v959 = vpop.f32.mrb[0].mxu0
      %v960 = vadd.f32 0.0, %v959
      %961 = vmatprep.mubr.bf16.mxu0 0
      %962 = vmatmul.mubr.bf16.gmra.mrb[0].mxu0 %v342
      %v963 = vpop.f32.mrb[0].mxu0
      %v964 = vadd.f32 0.0, %v963
      %v965 = vpop.f32.mrb[0].mxu0
      %v966 = vadd.f32 0.0, %v965
      %v967 = vpop.f32.mrb[0].mxu0
      %v968 = vadd.f32 0.0, %v967
      %v969 = vpop.f32.mrb[0].mxu0
      %v970 = vadd.f32 0.0, %v969
      %971 = vmatprep.mubr.bf16.mxu0 0
      %972 = vmatmul.mubr.bf16.gmra.mrb[0].mxu0 %v343
      %v973 = vpop.f32.mrb[0].mxu0
      %v974 = vadd.f32 0.0, %v973
      %v975 = vpop.f32.mrb[0].mxu0
      %v976 = vadd.f32 0.0, %v975
      %v977 = vpop.f32.mrb[0].mxu0
      %v978 = vadd.f32 0.0, %v977
      %v979 = vpop.f32.mrb[0].mxu0
      %v980 = vadd.f32 0.0, %v979
      %981 = vmatprep.mubr.bf16.mxu0 0
      %982 = vmatmul.mubr.bf16.gmra.mrb[0].mxu0 %v344
      %v983 = vpop.f32.mrb[0].mxu0
      %v984 = vadd.f32 0.0, %v983
      %v985 = vpop.f32.mrb[0].mxu0
      %v986 = vadd.f32 0.0, %v985
      %v987 = vpop.f32.mrb[0].mxu0
      %v988 = vadd.f32 0.0, %v987
      %v989 = vpop.f32.mrb[0].mxu0
      %v990 = vadd.f32 0.0, %v989
      %991 = vmatprep.mubr.bf16.mxu0 0
      %992 = vmatmul.mubr.bf16.gmra.mrb[0].mxu0 %v345
      %v993 = vpop.f32.mrb[0].mxu0
      %v994 = vadd.f32 0.0, %v993
      %v995 = vpop.f32.mrb[0].mxu0
      %v996 = vadd.f32 0.0, %v995
      %v997 = vpop.f32.mrb[0].mxu0
      %v998 = vadd.f32 0.0, %v997
      %v999 = vpop.f32.mrb[0].mxu0
      %v1000 = vadd.f32 0.0, %v999
      %1001 = vmatprep.mubr.bf16.mxu0 0
      %1002 = vmatmul.mubr.bf16.gmra.mrb[0].mxu0 %v346
      %v1003 = vpop.f32.mrb[0].mxu0
      %v1004 = vadd.f32 0.0, %v1003
      %v1005 = vpop.f32.mrb[0].mxu0
      %v1006 = vadd.f32 0.0, %v1005
      %v1007 = vpop.f32.mrb[0].mxu0
      %v1008 = vadd.f32 0.0, %v1007
      %v1009 = vpop.f32.mrb[0].mxu0
      %v1010 = vadd.f32 0.0, %v1009
      %1011 = vmatprep.mubr.bf16.mxu0 0
      %1012 = vmatmul.mubr.bf16.gmra.mrb[0].mxu0 %v347
      %v1013 = vpop.f32.mrb[0].mxu0
      %v1014 = vadd.f32 0.0, %v1013
      %v1015 = vpop.f32.mrb[0].mxu0
      %v1016 = vadd.f32 0.0, %v1015
      %v1017 = vpop.f32.mrb[0].mxu0
      %v1018 = vadd.f32 0.0, %v1017
      %v1019 = vpop.f32.mrb[0].mxu0
      %v1020 = vadd.f32 0.0, %v1019
      %1021 = vdwg.mxu0
      %1022 = vmatprep.subr.bf16.mxu0 %v657
      %1023 = vmatpush1.bf16.msra.mxu0 %v656
      %1024 = vmatprep.subr.bf16.mxu0 %v666
      %1025 = vmatpush1.bf16.msra.mxu0 %v665
      %1026 = vmatprep.subr.bf16.mxu0 %v675
      %1027 = vmatpush1.bf16.msra.mxu0 %v674
      %1028 = vmatprep.subr.bf16.mxu0 %v684
      %1029 = vmatpush1.bf16.msra.mxu0 %v683
      %1030 = vmatprep.subr.bf16.mxu0 %v693
      %1031 = vmatpush1.bf16.msra.mxu0 %v692
      %1032 = vmatprep.subr.bf16.mxu0 %v702
      %1033 = vmatpush1.bf16.msra.mxu0 %v701
      %1034 = vmatprep.subr.bf16.mxu0 %v711
      %1035 = vmatpush1.bf16.msra.mxu0 %v710
      %1036 = vmatprep.subr.bf16.mxu0 %v720
      %1037 = vmatpush1.bf16.msra.mxu0 %v719
      %1038 = vmatprep.subr.bf16.mxu0 0
      %1039 = vmatpush1.bf16.msra.mxu0 0
      %1040 = vmatprep.subr.bf16.mxu0 0
      %1041 = vmatpush1.bf16.msra.mxu0 0
      %1042 = vmatprep.subr.bf16.mxu0 0
      %1043 = vmatpush1.bf16.msra.mxu0 0
      %1044 = vmatprep.subr.bf16.mxu0 0
      %1045 = vmatpush1.bf16.msra.mxu0 0
      %1046 = vmatprep.subr.bf16.mxu0 0
      %1047 = vmatpush1.bf16.msra.mxu0 0
      %1048 = vmatprep.subr.bf16.mxu0 0
      %1049 = vmatpush1.bf16.msra.mxu0 0
      %1050 = vmatprep.subr.bf16.mxu0 0
      %1051 = vmatpush1.bf16.msra.mxu0 0
      %1052 = vmatprep.subr.bf16.mxu0 0
      %1053 = vmatpush1.bf16.msra.mxu0 0
      %1054 = vmatprep.mubr.bf16.mxu0 0
      %1055 = vmatmul.mubr.bf16.gmra.mrb[0].mxu0 %v340
      %v1056 = vpop.f32.mrb[0].mxu0
      %v1057 = vadd.f32 0.0, %v1056
      %v1058 = vpop.f32.mrb[0].mxu0
      %v1059 = vadd.f32 0.0, %v1058
      %v1060 = vpop.f32.mrb[0].mxu0
      %v1061 = vadd.f32 0.0, %v1060
      %v1062 = vpop.f32.mrb[0].mxu0
      %v1063 = vadd.f32 0.0, %v1062
      %1064 = vmatprep.mubr.bf16.mxu0 0
      %1065 = vmatmul.mubr.bf16.gmra.mrb[0].mxu0 %v341
      %v1066 = vpop.f32.mrb[0].mxu0
      %v1067 = vadd.f32 0.0, %v1066
      %v1068 = vpop.f32.mrb[0].mxu0
      %v1069 = vadd.f32 0.0, %v1068
      %v1070 = vpop.f32.mrb[0].mxu0
      %v1071 = vadd.f32 0.0, %v1070
      %v1072 = vpop.f32.mrb[0].mxu0
      %v1073 = vadd.f32 0.0, %v1072
      %1074 = vmatprep.mubr.bf16.mxu0 0
      %1075 = vmatmul.mubr.bf16.gmra.mrb[0].mxu0 %v342
      %v1076 = vpop.f32.mrb[0].mxu0
      %v1077 = vadd.f32 0.0, %v1076
      %v1078 = vpop.f32.mrb[0].mxu0
      %v1079 = vadd.f32 0.0, %v1078
      %v1080 = vpop.f32.mrb[0].mxu0
      %v1081 = vadd.f32 0.0, %v1080
      %v1082 = vpop.f32.mrb[0].mxu0
      %v1083 = vadd.f32 0.0, %v1082
      %1084 = vmatprep.mubr.bf16.mxu0 0
      %1085 = vmatmul.mubr.bf16.gmra.mrb[0].mxu0 %v343
      %v1086 = vpop.f32.mrb[0].mxu0
      %v1087 = vadd.f32 0.0, %v1086
      %v1088 = vpop.f32.mrb[0].mxu0
      %v1089 = vadd.f32 0.0, %v1088
      %v1090 = vpop.f32.mrb[0].mxu0
      %v1091 = vadd.f32 0.0, %v1090
      %v1092 = vpop.f32.mrb[0].mxu0
      %v1093 = vadd.f32 0.0, %v1092
      %1094 = vmatprep.mubr.bf16.mxu0 0
      %1095 = vmatmul.mubr.bf16.gmra.mrb[0].mxu0 %v344
      %v1096 = vpop.f32.mrb[0].mxu0
      %v1097 = vadd.f32 0.0, %v1096
      %v1098 = vpop.f32.mrb[0].mxu0
      %v1099 = vadd.f32 0.0, %v1098
      %v1100 = vpop.f32.mrb[0].mxu0
      %v1101 = vadd.f32 0.0, %v1100
      %v1102 = vpop.f32.mrb[0].mxu0
      %v1103 = vadd.f32 0.0, %v1102
      %1104 = vmatprep.mubr.bf16.mxu0 0
      %1105 = vmatmul.mubr.bf16.gmra.mrb[0].mxu0 %v345
      %v1106 = vpop.f32.mrb[0].mxu0
      %v1107 = vadd.f32 0.0, %v1106
      %v1108 = vpop.f32.mrb[0].mxu0
      %v1109 = vadd.f32 0.0, %v1108
      %v1110 = vpop.f32.mrb[0].mxu0
      %v1111 = vadd.f32 0.0, %v1110
      %v1112 = vpop.f32.mrb[0].mxu0
      %v1113 = vadd.f32 0.0, %v1112
      %1114 = vmatprep.mubr.bf16.mxu0 0
      %1115 = vmatmul.mubr.bf16.gmra.mrb[0].mxu0 %v346
      %v1116 = vpop.f32.mrb[0].mxu0
      %v1117 = vadd.f32 0.0, %v1116
      %v1118 = vpop.f32.mrb[0].mxu0
      %v1119 = vadd.f32 0.0, %v1118
      %v1120 = vpop.f32.mrb[0].mxu0
      %v1121 = vadd.f32 0.0, %v1120
      %v1122 = vpop.f32.mrb[0].mxu0
      %v1123 = vadd.f32 0.0, %v1122
      %1124 = vmatprep.mubr.bf16.mxu0 0
      %1125 = vmatmul.mubr.bf16.gmra.mrb[0].mxu0 %v347
      %v1126 = vpop.f32.mrb[0].mxu0
      %v1127 = vadd.f32 0.0, %v1126
      %v1128 = vpop.f32.mrb[0].mxu0
      %v1129 = vadd.f32 0.0, %v1128
      %v1130 = vpop.f32.mrb[0].mxu0
      %v1131 = vadd.f32 0.0, %v1130
      %v1132 = vpop.f32.mrb[0].mxu0
      %v1133 = vadd.f32 0.0, %v1132
      %1134 = vdwg.mxu0
      %1135 = vmatprep.subr.bf16.mxu0 %v659
      %1136 = vmatpush1.bf16.msra.mxu0 %v658
      %1137 = vmatprep.subr.bf16.mxu0 %v668
      %1138 = vmatpush1.bf16.msra.mxu0 %v667
      %1139 = vmatprep.subr.bf16.mxu0 %v677
      %1140 = vmatpush1.bf16.msra.mxu0 %v676
      %1141 = vmatprep.subr.bf16.mxu0 %v686
      %1142 = vmatpush1.bf16.msra.mxu0 %v685
      %1143 = vmatprep.subr.bf16.mxu0 %v695
      %1144 = vmatpush1.bf16.msra.mxu0 %v694
      %1145 = vmatprep.subr.bf16.mxu0 %v704
      %1146 = vmatpush1.bf16.msra.mxu0 %v703
      %1147 = vmatprep.subr.bf16.mxu0 %v713
      %1148 = vmatpush1.bf16.msra.mxu0 %v712
      %1149 = vmatprep.subr.bf16.mxu0 %v722
      %1150 = vmatpush1.bf16.msra.mxu0 %v721
      %1151 = vmatprep.subr.bf16.mxu0 0
      %1152 = vmatpush1.bf16.msra.mxu0 0
      %1153 = vmatprep.subr.bf16.mxu0 0
      %1154 = vmatpush1.bf16.msra.mxu0 0
      %1155 = vmatprep.subr.bf16.mxu0 0
      %1156 = vmatpush1.bf16.msra.mxu0 0
      %1157 = vmatprep.subr.bf16.mxu0 0
      %1158 = vmatpush1.bf16.msra.mxu0 0
      %1159 = vmatprep.subr.bf16.mxu0 0
      %1160 = vmatpush1.bf16.msra.mxu0 0
      %1161 = vmatprep.subr.bf16.mxu0 0
      %1162 = vmatpush1.bf16.msra.mxu0 0
      %1163 = vmatprep.subr.bf16.mxu0 0
      %1164 = vmatpush1.bf16.msra.mxu0 0
      %1165 = vmatprep.subr.bf16.mxu0 0
      %1166 = vmatpush1.bf16.msra.mxu0 0
      %1167 = vmatprep.mubr.bf16.mxu0 0
      %1168 = vmatmul.mubr.bf16.gmra.mrb[0].mxu0 %v340
      %v1169 = vpop.f32.mrb[0].mxu0
      %v1170 = vadd.f32 0.0, %v1169
      %v1171 = vpop.f32.mrb[0].mxu0
      %v1172 = vadd.f32 0.0, %v1171
      %v1173 = vpop.f32.mrb[0].mxu0
      %v1174 = vadd.f32 0.0, %v1173
      %v1175 = vpop.f32.mrb[0].mxu0
      %v1176 = vadd.f32 0.0, %v1175
      %1177 = vmatprep.mubr.bf16.mxu0 0
      %1178 = vmatmul.mubr.bf16.gmra.mrb[0].mxu0 %v341
      %v1179 = vpop.f32.mrb[0].mxu0
      %v1180 = vadd.f32 0.0, %v1179
      %v1181 = vpop.f32.mrb[0].mxu0
      %v1182 = vadd.f32 0.0, %v1181
      %v1183 = vpop.f32.mrb[0].mxu0
      %v1184 = vadd.f32 0.0, %v1183
      %v1185 = vpop.f32.mrb[0].mxu0
      %v1186 = vadd.f32 0.0, %v1185
      %1187 = vmatprep.mubr.bf16.mxu0 0
      %1188 = vmatmul.mubr.bf16.gmra.mrb[0].mxu0 %v342
      %v1189 = vpop.f32.mrb[0].mxu0
      %v1190 = vadd.f32 0.0, %v1189
      %v1191 = vpop.f32.mrb[0].mxu0
      %v1192 = vadd.f32 0.0, %v1191
      %v1193 = vpop.f32.mrb[0].mxu0
      %v1194 = vadd.f32 0.0, %v1193
      %v1195 = vpop.f32.mrb[0].mxu0
      %v1196 = vadd.f32 0.0, %v1195
      %1197 = vmatprep.mubr.bf16.mxu0 0
      %1198 = vmatmul.mubr.bf16.gmra.mrb[0].mxu0 %v343
      %v1199 = vpop.f32.mrb[0].mxu0
      %v1200 = vadd.f32 0.0, %v1199
      %v1201 = vpop.f32.mrb[0].mxu0
      %v1202 = vadd.f32 0.0, %v1201
      %v1203 = vpop.f32.mrb[0].mxu0
      %v1204 = vadd.f32 0.0, %v1203
      %v1205 = vpop.f32.mrb[0].mxu0
      %v1206 = vadd.f32 0.0, %v1205
      %1207 = vmatprep.mubr.bf16.mxu0 0
      %1208 = vmatmul.mubr.bf16.gmra.mrb[0].mxu0 %v344
      %v1209 = vpop.f32.mrb[0].mxu0
      %v1210 = vadd.f32 0.0, %v1209
      %v1211 = vpop.f32.mrb[0].mxu0
      %v1212 = vadd.f32 0.0, %v1211
      %v1213 = vpop.f32.mrb[0].mxu0
      %v1214 = vadd.f32 0.0, %v1213
      %v1215 = vpop.f32.mrb[0].mxu0
      %v1216 = vadd.f32 0.0, %v1215
      %1217 = vmatprep.mubr.bf16.mxu0 0
      %1218 = vmatmul.mubr.bf16.gmra.mrb[0].mxu0 %v345
      %v1219 = vpop.f32.mrb[0].mxu0
      %v1220 = vadd.f32 0.0, %v1219
      %v1221 = vpop.f32.mrb[0].mxu0
      %v1222 = vadd.f32 0.0, %v1221
      %v1223 = vpop.f32.mrb[0].mxu0
      %v1224 = vadd.f32 0.0, %v1223
      %v1225 = vpop.f32.mrb[0].mxu0
      %v1226 = vadd.f32 0.0, %v1225
      %1227 = vmatprep.mubr.bf16.mxu0 0
      %1228 = vmatmul.mubr.bf16.gmra.mrb[0].mxu0 %v346
      %v1229 = vpop.f32.mrb[0].mxu0
      %v1230 = vadd.f32 0.0, %v1229
      %v1231 = vpop.f32.mrb[0].mxu0
      %v1232 = vadd.f32 0.0, %v1231
      %v1233 = vpop.f32.mrb[0].mxu0
      %v1234 = vadd.f32 0.0, %v1233
      %v1235 = vpop.f32.mrb[0].mxu0
      %v1236 = vadd.f32 0.0, %v1235
      %1237 = vmatprep.mubr.bf16.mxu0 0
      %1238 = vmatmul.mubr.bf16.gmra.mrb[0].mxu0 %v347
      %v1239 = vpop.f32.mrb[0].mxu0
      %v1240 = vadd.f32 0.0, %v1239
      %v1241 = vpop.f32.mrb[0].mxu0
      %v1242 = vadd.f32 0.0, %v1241
      %v1243 = vpop.f32.mrb[0].mxu0
      %v1244 = vadd.f32 0.0, %v1243
      %v1245 = vpop.f32.mrb[0].mxu0
      %v1246 = vadd.f32 0.0, %v1245
      %1247 = vdwg.mxu0
      %1248 = vmatprep.subr.bf16.mxu0 0
      %1249 = vmatpush1.bf16.msra.mxu0 %v660
      %1250 = vmatprep.subr.bf16.mxu0 0
      %1251 = vmatpush1.bf16.msra.mxu0 %v669
      %1252 = vmatprep.subr.bf16.mxu0 0
      %1253 = vmatpush1.bf16.msra.mxu0 %v678
      %1254 = vmatprep.subr.bf16.mxu0 0
      %1255 = vmatpush1.bf16.msra.mxu0 %v687
      %1256 = vmatprep.subr.bf16.mxu0 0
      %1257 = vmatpush1.bf16.msra.mxu0 %v696
      %1258 = vmatprep.subr.bf16.mxu0 0
      %1259 = vmatpush1.bf16.msra.mxu0 %v705
      %1260 = vmatprep.subr.bf16.mxu0 0
      %1261 = vmatpush1.bf16.msra.mxu0 %v714
      %1262 = vmatprep.subr.bf16.mxu0 0
      %1263 = vmatpush1.bf16.msra.mxu0 %v723
      %1264 = vmatprep.subr.bf16.mxu0 0
      %1265 = vmatpush1.bf16.msra.mxu0 0
      %1266 = vmatprep.subr.bf16.mxu0 0
      %1267 = vmatpush1.bf16.msra.mxu0 0
      %1268 = vmatprep.subr.bf16.mxu0 0
      %1269 = vmatpush1.bf16.msra.mxu0 0
      %1270 = vmatprep.subr.bf16.mxu0 0
      %1271 = vmatpush1.bf16.msra.mxu0 0
      %1272 = vmatprep.subr.bf16.mxu0 0
      %1273 = vmatpush1.bf16.msra.mxu0 0
      %1274 = vmatprep.subr.bf16.mxu0 0
      %1275 = vmatpush1.bf16.msra.mxu0 0
      %1276 = vmatprep.subr.bf16.mxu0 0
      %1277 = vmatpush1.bf16.msra.mxu0 0
      %1278 = vmatprep.subr.bf16.mxu0 0
      %1279 = vmatpush1.bf16.msra.mxu0 0
      %1280 = vmatprep.mubr.bf16.mxu0 0
      %1281 = vmatmul.mubr.bf16.gmra.mrb[0].mxu0 %v340
      %v1282 = vpop.f32.mrb[0].mxu0
      %v1283 = vadd.f32 0.0, %v1282
      %v1284 = vpop.f32.mrb[0].mxu0
      %v1285 = vpop.f32.mrb[0].mxu0
      %v1286 = vadd.f32 0.0, %v1285
      %v1287 = vpop.f32.mrb[0].mxu0
      %1288 = vmatprep.mubr.bf16.mxu0 0
      %1289 = vmatmul.mubr.bf16.gmra.mrb[0].mxu0 %v341
      %v1290 = vpop.f32.mrb[0].mxu0
      %v1291 = vadd.f32 0.0, %v1290
      %v1292 = vpop.f32.mrb[0].mxu0
      %v1293 = vpop.f32.mrb[0].mxu0
      %v1294 = vadd.f32 0.0, %v1293
      %v1295 = vpop.f32.mrb[0].mxu0
      %1296 = vmatprep.mubr.bf16.mxu0 0
      %1297 = vmatmul.mubr.bf16.gmra.mrb[0].mxu0 %v342
      %v1298 = vpop.f32.mrb[0].mxu0
      %v1299 = vadd.f32 0.0, %v1298
      %v1300 = vpop.f32.mrb[0].mxu0
      %v1301 = vpop.f32.mrb[0].mxu0
      %v1302 = vadd.f32 0.0, %v1301
      %v1303 = vpop.f32.mrb[0].mxu0
      %1304 = vmatprep.mubr.bf16.mxu0 0
      %1305 = vmatmul.mubr.bf16.gmra.mrb[0].mxu0 %v343
      %v1306 = vpop.f32.mrb[0].mxu0
      %v1307 = vadd.f32 0.0, %v1306
      %v1308 = vpop.f32.mrb[0].mxu0
      %v1309 = vpop.f32.mrb[0].mxu0
      %v1310 = vadd.f32 0.0, %v1309
      %v1311 = vpop.f32.mrb[0].mxu0
      %1312 = vmatprep.mubr.bf16.mxu0 0
      %1313 = vmatmul.mubr.bf16.gmra.mrb[0].mxu0 %v344
      %v1314 = vpop.f32.mrb[0].mxu0
      %v1315 = vadd.f32 0.0, %v1314
      %v1316 = vpop.f32.mrb[0].mxu0
      %v1317 = vpop.f32.mrb[0].mxu0
      %v1318 = vadd.f32 0.0, %v1317
      %v1319 = vpop.f32.mrb[0].mxu0
      %1320 = vmatprep.mubr.bf16.mxu0 0
      %1321 = vmatmul.mubr.bf16.gmra.mrb[0].mxu0 %v345
      %v1322 = vpop.f32.mrb[0].mxu0
      %v1323 = vadd.f32 0.0, %v1322
      %v1324 = vpop.f32.mrb[0].mxu0
      %v1325 = vpop.f32.mrb[0].mxu0
      %v1326 = vadd.f32 0.0, %v1325
      %v1327 = vpop.f32.mrb[0].mxu0
      %1328 = vmatprep.mubr.bf16.mxu0 0
      %1329 = vmatmul.mubr.bf16.gmra.mrb[0].mxu0 %v346
      %v1330 = vpop.f32.mrb[0].mxu0
      %v1331 = vadd.f32 0.0, %v1330
      %v1332 = vpop.f32.mrb[0].mxu0
      %v1333 = vpop.f32.mrb[0].mxu0
      %v1334 = vadd.f32 0.0, %v1333
      %v1335 = vpop.f32.mrb[0].mxu0
      %1336 = vmatprep.mubr.bf16.mxu0 0
      %1337 = vmatmul.mubr.bf16.gmra.mrb[0].mxu0 %v347
      %v1338 = vpop.f32.mrb[0].mxu0
      %v1339 = vadd.f32 0.0, %v1338
      %v1340 = vpop.f32.mrb[0].mxu0
      %v1341 = vpop.f32.mrb[0].mxu0
      %v1342 = vadd.f32 0.0, %v1341
      %v1343 = vpop.f32.mrb[0].mxu0
      %1344 = vdwg.mxu0
      %vm1361 = vcmask 1046528
      %v1362 = vrot.slane %v833, 1
      %v1363 = vrot.slane %v837, 1
      %v1364 = vsel %vm1361, %v1362, %v1363
      %v1365 = vrot.slane %v843, 1
      %v1366 = vrot.slane %v847, 1
      %v1367 = vsel %vm1361, %v1365, %v1366
      %v1368 = vrot.slane %v853, 1
      %v1369 = vrot.slane %v857, 1
      %v1370 = vsel %vm1361, %v1368, %v1369
      %v1371 = vrot.slane %v863, 1
      %v1372 = vrot.slane %v867, 1
      %v1373 = vsel %vm1361, %v1371, %v1372
      %v1374 = vrot.slane %v873, 1
      %v1375 = vrot.slane %v877, 1
      %v1376 = vsel %vm1361, %v1374, %v1375
      %v1377 = vrot.slane %v883, 1
      %v1378 = vrot.slane %v887, 1
      %v1379 = vsel %vm1361, %v1377, %v1378
      %v1380 = vrot.slane %v893, 1
      %v1381 = vrot.slane %v897, 1
      %v1382 = vsel %vm1361, %v1380, %v1381
      %v1383 = vrot.slane %v903, 1
      %v1384 = vrot.slane %v907, 1
      %v1385 = vsel %vm1361, %v1383, %v1384
      %v1402 = vadd.f32 %v831, %v1364
      %v1403 = vadd.f32 %v835, %v1363
      %v1404 = vadd.f32 %v841, %v1367
      %v1405 = vadd.f32 %v845, %v1366
      %v1406 = vadd.f32 %v851, %v1370
      %v1407 = vadd.f32 %v855, %v1369
      %v1408 = vadd.f32 %v861, %v1373
      %v1409 = vadd.f32 %v865, %v1372
      %v1410 = vadd.f32 %v871, %v1376
      %v1411 = vadd.f32 %v875, %v1375
      %v1412 = vadd.f32 %v881, %v1379
      %v1413 = vadd.f32 %v885, %v1378
      %v1414 = vadd.f32 %v891, %v1382
      %v1415 = vadd.f32 %v895, %v1381
      %v1416 = vadd.f32 %v901, %v1385
      %v1417 = vadd.f32 %v905, %v1384
      %v1418 = vsel %vm1361, %v1403, -inf
      %v1419 = vmax.f32 %v1402, %v1418
      %v1420 = vrot.slane %v1419, 4
      %v1421 = vmax.f32 %v1419, %v1420
      %v1422 = vrot.slane %v1421, 2
      %v1423 = vmax.f32 %v1421, %v1422
      %v1424 = vrot.slane %v1423, 1
      %v1425 = vmax.f32 %v1423, %v1424
      %v1426 = vsel %vm1361, %v1405, -inf
      %v1427 = vmax.f32 %v1404, %v1426
      %v1428 = vrot.slane %v1427, 4
      %v1429 = vmax.f32 %v1427, %v1428
      %v1430 = vrot.slane %v1429, 2
      %v1431 = vmax.f32 %v1429, %v1430
      %v1432 = vrot.slane %v1431, 1
      %v1433 = vmax.f32 %v1431, %v1432
      %v1434 = vsel %vm1361, %v1407, -inf
      %v1435 = vmax.f32 %v1406, %v1434
      %v1436 = vrot.slane %v1435, 4
      %v1437 = vmax.f32 %v1435, %v1436
      %v1438 = vrot.slane %v1437, 2
      %v1439 = vmax.f32 %v1437, %v1438
      %v1440 = vrot.slane %v1439, 1
      %v1441 = vmax.f32 %v1439, %v1440
      %v1442 = vsel %vm1361, %v1409, -inf
      %v1443 = vmax.f32 %v1408, %v1442
      %v1444 = vrot.slane %v1443, 4
      %v1445 = vmax.f32 %v1443, %v1444
      %v1446 = vrot.slane %v1445, 2
      %v1447 = vmax.f32 %v1445, %v1446
      %v1448 = vrot.slane %v1447, 1
      %v1449 = vmax.f32 %v1447, %v1448
      %v1450 = vsel %vm1361, %v1411, -inf
      %v1451 = vmax.f32 %v1410, %v1450
      %v1452 = vrot.slane %v1451, 4
      %v1453 = vmax.f32 %v1451, %v1452
      %v1454 = vrot.slane %v1453, 2
      %v1455 = vmax.f32 %v1453, %v1454
      %v1456 = vrot.slane %v1455, 1
      %v1457 = vmax.f32 %v1455, %v1456
      %v1458 = vsel %vm1361, %v1413, -inf
      %v1459 = vmax.f32 %v1412, %v1458
      %v1460 = vrot.slane %v1459, 4
      %v1461 = vmax.f32 %v1459, %v1460
      %v1462 = vrot.slane %v1461, 2
      %v1463 = vmax.f32 %v1461, %v1462
      %v1464 = vrot.slane %v1463, 1
      %v1465 = vmax.f32 %v1463, %v1464
      %v1466 = vsel %vm1361, %v1415, -inf
      %v1467 = vmax.f32 %v1414, %v1466
      %v1468 = vrot.slane %v1467, 4
      %v1469 = vmax.f32 %v1467, %v1468
      %v1470 = vrot.slane %v1469, 2
      %v1471 = vmax.f32 %v1469, %v1470
      %v1472 = vrot.slane %v1471, 1
      %v1473 = vmax.f32 %v1471, %v1472
      %v1474 = vsel %vm1361, %v1417, -inf
      %v1475 = vmax.f32 %v1416, %v1474
      %v1476 = vrot.slane %v1475, 4
      %v1477 = vmax.f32 %v1475, %v1476
      %v1478 = vrot.slane %v1477, 2
      %v1479 = vmax.f32 %v1477, %v1478
      %v1480 = vrot.slane %v1479, 1
      %v1481 = vmax.f32 %v1479, %v1480
      %v1498 = vrot.slane %v946, 1
      %v1499 = vrot.slane %v950, 1
      %v1500 = vsel %vm1361, %v1498, %v1499
      %v1501 = vrot.slane %v956, 1
      %v1502 = vrot.slane %v960, 1
      %v1503 = vsel %vm1361, %v1501, %v1502
      %v1504 = vrot.slane %v966, 1
      %v1505 = vrot.slane %v970, 1
      %v1506 = vsel %vm1361, %v1504, %v1505
      %v1507 = vrot.slane %v976, 1
      %v1508 = vrot.slane %v980, 1
      %v1509 = vsel %vm1361, %v1507, %v1508
      %v1510 = vrot.slane %v986, 1
      %v1511 = vrot.slane %v990, 1
      %v1512 = vsel %vm1361, %v1510, %v1511
      %v1513 = vrot.slane %v996, 1
      %v1514 = vrot.slane %v1000, 1
      %v1515 = vsel %vm1361, %v1513, %v1514
      %v1516 = vrot.slane %v1006, 1
      %v1517 = vrot.slane %v1010, 1
      %v1518 = vsel %vm1361, %v1516, %v1517
      %v1519 = vrot.slane %v1016, 1
      %v1520 = vrot.slane %v1020, 1
      %v1521 = vsel %vm1361, %v1519, %v1520
      %v1538 = vadd.f32 %v944, %v1500
      %v1539 = vadd.f32 %v948, %v1499
      %v1540 = vadd.f32 %v954, %v1503
      %v1541 = vadd.f32 %v958, %v1502
      %v1542 = vadd.f32 %v964, %v1506
      %v1543 = vadd.f32 %v968, %v1505
      %v1544 = vadd.f32 %v974, %v1509
      %v1545 = vadd.f32 %v978, %v1508
      %v1546 = vadd.f32 %v984, %v1512
      %v1547 = vadd.f32 %v988, %v1511
      %v1548 = vadd.f32 %v994, %v1515
      %v1549 = vadd.f32 %v998, %v1514
      %v1550 = vadd.f32 %v1004, %v1518
      %v1551 = vadd.f32 %v1008, %v1517
      %v1552 = vadd.f32 %v1014, %v1521
      %v1553 = vadd.f32 %v1018, %v1520
      %vm1570 = vcmask 1045504
      %v1571 = vrot.slane %v1057, 2
      %v1572 = vrot.slane %v1061, 2
      %v1573 = vsel %vm1570, %v1571, %v1572
      %v1574 = vrot.slane %v1067, 2
      %v1575 = vrot.slane %v1071, 2
      %v1576 = vsel %vm1570, %v1574, %v1575
      %v1577 = vrot.slane %v1077, 2
      %v1578 = vrot.slane %v1081, 2
      %v1579 = vsel %vm1570, %v1577, %v1578
      %v1580 = vrot.slane %v1087, 2
      %v1581 = vrot.slane %v1091, 2
      %v1582 = vsel %vm1570, %v1580, %v1581
      %v1583 = vrot.slane %v1097, 2
      %v1584 = vrot.slane %v1101, 2
      %v1585 = vsel %vm1570, %v1583, %v1584
      %v1586 = vrot.slane %v1107, 2
      %v1587 = vrot.slane %v1111, 2
      %v1588 = vsel %vm1570, %v1586, %v1587
      %v1589 = vrot.slane %v1117, 2
      %v1590 = vrot.slane %v1121, 2
      %v1591 = vsel %vm1570, %v1589, %v1590
      %v1592 = vrot.slane %v1127, 2
      %v1593 = vrot.slane %v1131, 2
      %v1594 = vsel %vm1570, %v1592, %v1593
      %v1611 = vadd.f32 %v1538, %v1573
      %v1612 = vadd.f32 %v1539, %v1572
      %v1613 = vadd.f32 %v1540, %v1576
      %v1614 = vadd.f32 %v1541, %v1575
      %v1615 = vadd.f32 %v1542, %v1579
      %v1616 = vadd.f32 %v1543, %v1578
      %v1617 = vadd.f32 %v1544, %v1582
      %v1618 = vadd.f32 %v1545, %v1581
      %v1619 = vadd.f32 %v1546, %v1585
      %v1620 = vadd.f32 %v1547, %v1584
      %v1621 = vadd.f32 %v1548, %v1588
      %v1622 = vadd.f32 %v1549, %v1587
      %v1623 = vadd.f32 %v1550, %v1591
      %v1624 = vadd.f32 %v1551, %v1590
      %v1625 = vadd.f32 %v1552, %v1594
      %v1626 = vadd.f32 %v1553, %v1593
      %v1627 = vsel %vm1570, %v1612, -inf
      %v1628 = vmax.f32 %v1611, %v1627
      %v1629 = vrot.slane %v1628, 4
      %v1630 = vmax.f32 %v1628, %v1629
      %v1631 = vrot.slane %v1630, 2
      %v1632 = vmax.f32 %v1630, %v1631
      %v1633 = vrot.slane %v1632, 1
      %v1634 = vmax.f32 %v1632, %v1633
      %v1635 = vsel %vm1570, %v1614, -inf
      %v1636 = vmax.f32 %v1613, %v1635
      %v1637 = vrot.slane %v1636, 4
      %v1638 = vmax.f32 %v1636, %v1637
      %v1639 = vrot.slane %v1638, 2
      %v1640 = vmax.f32 %v1638, %v1639
      %v1641 = vrot.slane %v1640, 1
      %v1642 = vmax.f32 %v1640, %v1641
      %v1643 = vsel %vm1570, %v1616, -inf
      %v1644 = vmax.f32 %v1615, %v1643
      %v1645 = vrot.slane %v1644, 4
      %v1646 = vmax.f32 %v1644, %v1645
      %v1647 = vrot.slane %v1646, 2
      %v1648 = vmax.f32 %v1646, %v1647
      %v1649 = vrot.slane %v1648, 1
      %v1650 = vmax.f32 %v1648, %v1649
      %v1651 = vsel %vm1570, %v1618, -inf
      %v1652 = vmax.f32 %v1617, %v1651
      %v1653 = vrot.slane %v1652, 4
      %v1654 = vmax.f32 %v1652, %v1653
      %v1655 = vrot.slane %v1654, 2
      %v1656 = vmax.f32 %v1654, %v1655
      %v1657 = vrot.slane %v1656, 1
      %v1658 = vmax.f32 %v1656, %v1657
      %v1659 = vsel %vm1570, %v1620, -inf
      %v1660 = vmax.f32 %v1619, %v1659
      %v1661 = vrot.slane %v1660, 4
      %v1662 = vmax.f32 %v1660, %v1661
      %v1663 = vrot.slane %v1662, 2
      %v1664 = vmax.f32 %v1662, %v1663
      %v1665 = vrot.slane %v1664, 1
      %v1666 = vmax.f32 %v1664, %v1665
      %v1667 = vsel %vm1570, %v1622, -inf
      %v1668 = vmax.f32 %v1621, %v1667
      %v1669 = vrot.slane %v1668, 4
      %v1670 = vmax.f32 %v1668, %v1669
      %v1671 = vrot.slane %v1670, 2
      %v1672 = vmax.f32 %v1670, %v1671
      %v1673 = vrot.slane %v1672, 1
      %v1674 = vmax.f32 %v1672, %v1673
      %v1675 = vsel %vm1570, %v1624, -inf
      %v1676 = vmax.f32 %v1623, %v1675
      %v1677 = vrot.slane %v1676, 4
      %v1678 = vmax.f32 %v1676, %v1677
      %v1679 = vrot.slane %v1678, 2
      %v1680 = vmax.f32 %v1678, %v1679
      %v1681 = vrot.slane %v1680, 1
      %v1682 = vmax.f32 %v1680, %v1681
      %v1683 = vsel %vm1570, %v1626, -inf
      %v1684 = vmax.f32 %v1625, %v1683
      %v1685 = vrot.slane %v1684, 4
      %v1686 = vmax.f32 %v1684, %v1685
      %v1687 = vrot.slane %v1686, 2
      %v1688 = vmax.f32 %v1686, %v1687
      %v1689 = vrot.slane %v1688, 1
      %v1690 = vmax.f32 %v1688, %v1689
      %v1707 = vrot.slane %v1170, 1
      %v1708 = vrot.slane %v1174, 1
      %v1709 = vsel %vm1361, %v1707, %v1708
      %v1710 = vrot.slane %v1180, 1
      %v1711 = vrot.slane %v1184, 1
      %v1712 = vsel %vm1361, %v1710, %v1711
      %v1713 = vrot.slane %v1190, 1
      %v1714 = vrot.slane %v1194, 1
      %v1715 = vsel %vm1361, %v1713, %v1714
      %v1716 = vrot.slane %v1200, 1
      %v1717 = vrot.slane %v1204, 1
      %v1718 = vsel %vm1361, %v1716, %v1717
      %v1719 = vrot.slane %v1210, 1
      %v1720 = vrot.slane %v1214, 1
      %v1721 = vsel %vm1361, %v1719, %v1720
      %v1722 = vrot.slane %v1220, 1
      %v1723 = vrot.slane %v1224, 1
      %v1724 = vsel %vm1361, %v1722, %v1723
      %v1725 = vrot.slane %v1230, 1
      %v1726 = vrot.slane %v1234, 1
      %v1727 = vsel %vm1361, %v1725, %v1726
      %v1728 = vrot.slane %v1240, 1
      %v1729 = vrot.slane %v1244, 1
      %v1730 = vsel %vm1361, %v1728, %v1729
      %v1747 = vadd.f32 %v1059, %v1709
      %v1748 = vadd.f32 %v1063, %v1708
      %v1749 = vadd.f32 %v1069, %v1712
      %v1750 = vadd.f32 %v1073, %v1711
      %v1751 = vadd.f32 %v1079, %v1715
      %v1752 = vadd.f32 %v1083, %v1714
      %v1753 = vadd.f32 %v1089, %v1718
      %v1754 = vadd.f32 %v1093, %v1717
      %v1755 = vadd.f32 %v1099, %v1721
      %v1756 = vadd.f32 %v1103, %v1720
      %v1757 = vadd.f32 %v1109, %v1724
      %v1758 = vadd.f32 %v1113, %v1723
      %v1759 = vadd.f32 %v1119, %v1727
      %v1760 = vadd.f32 %v1123, %v1726
      %v1761 = vadd.f32 %v1129, %v1730
      %v1762 = vadd.f32 %v1133, %v1729
      %v1779 = vrot.slane %v1172, 2
      %v1780 = vrot.slane %v1176, 2
      %v1781 = vsel %vm1570, %v1779, %v1780
      %v1782 = vrot.slane %v1182, 2
      %v1783 = vrot.slane %v1186, 2
      %v1784 = vsel %vm1570, %v1782, %v1783
      %v1785 = vrot.slane %v1192, 2
      %v1786 = vrot.slane %v1196, 2
      %v1787 = vsel %vm1570, %v1785, %v1786
      %v1788 = vrot.slane %v1202, 2
      %v1789 = vrot.slane %v1206, 2
      %v1790 = vsel %vm1570, %v1788, %v1789
      %v1791 = vrot.slane %v1212, 2
      %v1792 = vrot.slane %v1216, 2
      %v1793 = vsel %vm1570, %v1791, %v1792
      %v1794 = vrot.slane %v1222, 2
      %v1795 = vrot.slane %v1226, 2
      %v1796 = vsel %vm1570, %v1794, %v1795
      %v1797 = vrot.slane %v1232, 2
      %v1798 = vrot.slane %v1236, 2
      %v1799 = vsel %vm1570, %v1797, %v1798
      %v1800 = vrot.slane %v1242, 2
      %v1801 = vrot.slane %v1246, 2
      %v1802 = vsel %vm1570, %v1800, %v1801
      %v1819 = vadd.f32 %v1747, %v1781
      %v1820 = vadd.f32 %v1748, %v1780
      %v1821 = vadd.f32 %v1749, %v1784
      %v1822 = vadd.f32 %v1750, %v1783
      %v1823 = vadd.f32 %v1751, %v1787
      %v1824 = vadd.f32 %v1752, %v1786
      %v1825 = vadd.f32 %v1753, %v1790
      %v1826 = vadd.f32 %v1754, %v1789
      %v1827 = vadd.f32 %v1755, %v1793
      %v1828 = vadd.f32 %v1756, %v1792
      %v1829 = vadd.f32 %v1757, %v1796
      %v1830 = vadd.f32 %v1758, %v1795
      %v1831 = vadd.f32 %v1759, %v1799
      %v1832 = vadd.f32 %v1760, %v1798
      %v1833 = vadd.f32 %v1761, %v1802
      %v1834 = vadd.f32 %v1762, %v1801
      %vm1851 = vcmask 1044480
      %v1852 = vrot.slane %v1283, 3
      %v1853 = vrot.slane %v1286, 3
      %v1854 = vsel %vm1851, %v1852, %v1853
      %v1855 = vrot.slane %v1291, 3
      %v1856 = vrot.slane %v1294, 3
      %v1857 = vsel %vm1851, %v1855, %v1856
      %v1858 = vrot.slane %v1299, 3
      %v1859 = vrot.slane %v1302, 3
      %v1860 = vsel %vm1851, %v1858, %v1859
      %v1861 = vrot.slane %v1307, 3
      %v1862 = vrot.slane %v1310, 3
      %v1863 = vsel %vm1851, %v1861, %v1862
      %v1864 = vrot.slane %v1315, 3
      %v1865 = vrot.slane %v1318, 3
      %v1866 = vsel %vm1851, %v1864, %v1865
      %v1867 = vrot.slane %v1323, 3
      %v1868 = vrot.slane %v1326, 3
      %v1869 = vsel %vm1851, %v1867, %v1868
      %v1870 = vrot.slane %v1331, 3
      %v1871 = vrot.slane %v1334, 3
      %v1872 = vsel %vm1851, %v1870, %v1871
      %v1873 = vrot.slane %v1339, 3
      %v1874 = vrot.slane %v1342, 3
      %v1875 = vsel %vm1851, %v1873, %v1874
      %v1892 = vadd.f32 %v1819, %v1854
      %v1893 = vadd.f32 %v1820, %v1853
      %v1894 = vadd.f32 %v1821, %v1857
      %v1895 = vadd.f32 %v1822, %v1856
      %v1896 = vadd.f32 %v1823, %v1860
      %v1897 = vadd.f32 %v1824, %v1859
      %v1898 = vadd.f32 %v1825, %v1863
      %v1899 = vadd.f32 %v1826, %v1862
      %v1900 = vadd.f32 %v1827, %v1866
      %v1901 = vadd.f32 %v1828, %v1865
      %v1902 = vadd.f32 %v1829, %v1869
      %v1903 = vadd.f32 %v1830, %v1868
      %v1904 = vadd.f32 %v1831, %v1872
      %v1905 = vadd.f32 %v1832, %v1871
      %v1906 = vadd.f32 %v1833, %v1875
      %v1907 = vadd.f32 %v1834, %v1874
      %v1908 = vsel %vm1851, %v1893, -inf
      %v1909 = vmax.f32 %v1892, %v1908
      %v1910 = vrot.slane %v1909, 4
      %v1911 = vmax.f32 %v1909, %v1910
      %v1912 = vrot.slane %v1911, 2
      %v1913 = vmax.f32 %v1911, %v1912
      %v1914 = vrot.slane %v1913, 1
      %v1915 = vmax.f32 %v1913, %v1914
      %v1916 = vsel %vm1851, %v1895, -inf
      %v1917 = vmax.f32 %v1894, %v1916
      %v1918 = vrot.slane %v1917, 4
      %v1919 = vmax.f32 %v1917, %v1918
      %v1920 = vrot.slane %v1919, 2
      %v1921 = vmax.f32 %v1919, %v1920
      %v1922 = vrot.slane %v1921, 1
      %v1923 = vmax.f32 %v1921, %v1922
      %v1924 = vsel %vm1851, %v1897, -inf
      %v1925 = vmax.f32 %v1896, %v1924
      %v1926 = vrot.slane %v1925, 4
      %v1927 = vmax.f32 %v1925, %v1926
      %v1928 = vrot.slane %v1927, 2
      %v1929 = vmax.f32 %v1927, %v1928
      %v1930 = vrot.slane %v1929, 1
      %v1931 = vmax.f32 %v1929, %v1930
      %v1932 = vsel %vm1851, %v1899, -inf
      %v1933 = vmax.f32 %v1898, %v1932
      %v1934 = vrot.slane %v1933, 4
      %v1935 = vmax.f32 %v1933, %v1934
      %v1936 = vrot.slane %v1935, 2
      %v1937 = vmax.f32 %v1935, %v1936
      %v1938 = vrot.slane %v1937, 1
      %v1939 = vmax.f32 %v1937, %v1938
      %v1940 = vsel %vm1851, %v1901, -inf
      %v1941 = vmax.f32 %v1900, %v1940
      %v1942 = vrot.slane %v1941, 4
      %v1943 = vmax.f32 %v1941, %v1942
      %v1944 = vrot.slane %v1943, 2
      %v1945 = vmax.f32 %v1943, %v1944
      %v1946 = vrot.slane %v1945, 1
      %v1947 = vmax.f32 %v1945, %v1946
      %v1948 = vsel %vm1851, %v1903, -inf
      %v1949 = vmax.f32 %v1902, %v1948
      %v1950 = vrot.slane %v1949, 4
      %v1951 = vmax.f32 %v1949, %v1950
      %v1952 = vrot.slane %v1951, 2
      %v1953 = vmax.f32 %v1951, %v1952
      %v1954 = vrot.slane %v1953, 1
      %v1955 = vmax.f32 %v1953, %v1954
      %v1956 = vsel %vm1851, %v1905, -inf
      %v1957 = vmax.f32 %v1904, %v1956
      %v1958 = vrot.slane %v1957, 4
      %v1959 = vmax.f32 %v1957, %v1958
      %v1960 = vrot.slane %v1959, 2
      %v1961 = vmax.f32 %v1959, %v1960
      %v1962 = vrot.slane %v1961, 1
      %v1963 = vmax.f32 %v1961, %v1962
      %v1964 = vsel %vm1851, %v1907, -inf
      %v1965 = vmax.f32 %v1906, %v1964
      %v1966 = vrot.slane %v1965, 4
      %v1967 = vmax.f32 %v1965, %v1966
      %v1968 = vrot.slane %v1967, 2
      %v1969 = vmax.f32 %v1967, %v1968
      %v1970 = vrot.slane %v1969, 1
      %v1971 = vmax.f32 %v1969, %v1970
      %vm1980 = vcmask 1041409
      %v1981 = vsel %vm1980, %v1433, %v1425
      %vm1982 = vcmask 1042434
      %v1983 = vsel %vm1982, %v1441, %v1981
      %vm1984 = vcmask 1043459
      %v1985 = vsel %vm1984, %v1449, %v1983
      %vm1986 = vcmask 1044484
      %v1987 = vsel %vm1986, %v1457, %v1985
      %vm1988 = vcmask 1045509
      %v1989 = vsel %vm1988, %v1465, %v1987
      %vm1990 = vcmask 1046534
      %v1991 = vsel %vm1990, %v1473, %v1989
      %vm1992 = vcmask 1047559
      %v1993 = vsel %vm1992, %v1481, %v1991
      %v2003 = vsel %vm1980, %v1642, %v1634
      %v2004 = vsel %vm1982, %v1650, %v2003
      %v2005 = vsel %vm1984, %v1658, %v2004
      %v2006 = vsel %vm1986, %v1666, %v2005
      %v2007 = vsel %vm1988, %v1674, %v2006
      %v2008 = vsel %vm1990, %v1682, %v2007
      %v2009 = vsel %vm1992, %v1690, %v2008
      %v2019 = vsel %vm1980, %v1923, %v1915
      %v2020 = vsel %vm1982, %v1931, %v2019
      %v2021 = vsel %vm1984, %v1939, %v2020
      %v2022 = vsel %vm1986, %v1947, %v2021
      %v2023 = vsel %vm1988, %v1955, %v2022
      %v2024 = vsel %vm1990, %v1963, %v2023
      %v2025 = vsel %vm1992, %v1971, %v2024
      %v2027 = vld [vmem:[%s2] sm:$0x7]
      %v2029 = vlaneseq
      %v2030 = vshrl.u32 %v2029, 7
      %v2031 = vsub.s32 0, %v2030
      %v2032 = vrot.slane %v2027, %v2031
      %v2033 = vlaneseq
      %v2034 = vshrl.u32 %v2033, 7
      %v2035 = vsub.s32 1, %v2034
      %v2036 = vrot.slane %v2027, %v2035
      %v2037 = vlaneseq
      %v2038 = vshrl.u32 %v2037, 7
      %v2039 = vsub.s32 2, %v2038
      %v2040 = vrot.slane %v2027, %v2039
      %v2044 = vadd.f32 %v1993, %v2032
      %v2045 = vadd.f32 %v2009, %v2036
      %v2046 = vadd.f32 %v2025, %v2040
      %v2047 = vmax.f32 %v2044, 0.0
      %v2048 = vmax.f32 %v2045, 0.0
      %v2049 = vmax.f32 %v2046, 0.0
      %v2050 = vpack.c.bf16 %v2047, %v2047
      %v2051 = vpack.c.bf16 %v2048, %v2048
      %v2052 = vpack.c.bf16 %v2049, %v2049
      %v2053 = vld [vmem:[%s3] sm:$0xf]
      %v2054 = vld [vmem:[%s3 + $0x4] sm:$0xf]
      %v2055 = vld [vmem:[%s3 + $0x8] sm:$0xf]
      %v2056 = vld [vmem:[%s3 + $0xc] sm:$0xf]
      %v2057 = vld [vmem:[%s3 + $0x10] sm:$0xf]
      %v2058 = vld [vmem:[%s3 + $0x14] sm:$0xf]
      %v2059 = vld [vmem:[%s3 + $0x18] sm:$0xf]
      %v2060 = vld [vmem:[%s3 + $0x1c] sm:$0xf]
      %v2061 = vld [vmem:[%s3 + $0x20] sm:$0xf]
      %v2062 = vld [vmem:[%s3 + $0x24] sm:$0xf]
      %v2063 = vld [vmem:[%s3 + $0x28] sm:$0xf]
      %v2064 = vld [vmem:[%s3 + $0x2c] sm:$0xf]
      %v2065 = vld [vmem:[%s3 + $0x30] sm:$0xf]
      %v2066 = vld [vmem:[%s3 + $0x34] sm:$0xf]
      %v2067 = vld [vmem:[%s3 + $0x38] sm:$0xf]
      %v2068 = vld [vmem:[%s3 + $0x3c] sm:$0xf]
      %v2069 = vld [vmem:[%s3 + $0x40] sm:$0xf]
      %v2070 = vld [vmem:[%s3 + $0x44] sm:$0xf]
      %v2071 = vld [vmem:[%s3 + $0x48] sm:$0xf]
      %v2072 = vld [vmem:[%s3 + $0x4c] sm:$0xf]
      %v2073 = vld [vmem:[%s3 + $0x50] sm:$0xf]
      %v2074 = vld [vmem:[%s3 + $0x54] sm:$0xf]
      %v2075 = vld [vmem:[%s3 + $0x58] sm:$0xf]
      %v2076 = vld [vmem:[%s3 + $0x5c] sm:$0xf]
      %v2077 = vld [vmem:[%s3 + $0x60] sm:$0xf]
      %v2078 = vld [vmem:[%s3 + $0x64] sm:$0xf]
      %v2079 = vld [vmem:[%s3 + $0x68] sm:$0xf]
      %v2080 = vld [vmem:[%s3 + $0x6c] sm:$0xf]
      %v2081 = vld [vmem:[%s3 + $0x70] sm:$0xf]
      %v2082 = vld [vmem:[%s3 + $0x74] sm:$0xf]
      %v2083 = vld [vmem:[%s3 + $0x78] sm:$0xf]
      %v2084 = vld [vmem:[%s3 + $0x7c] sm:$0xf]
      %v2085 = vld [vmem:[%s3 + $0x80] sm:$0xf]
      %v2086 = vld [vmem:[%s3 + $0x84] sm:$0xf]
      %v2087 = vld [vmem:[%s3 + $0x88] sm:$0xf]
      %v2088 = vld [vmem:[%s3 + $0x8c] sm:$0xf]
      %v2089 = vld [vmem:[%s3 + $0x90] sm:$0xf]
      %v2090 = vld [vmem:[%s3 + $0x94] sm:$0xf]
      %v2091 = vld [vmem:[%s3 + $0x98] sm:$0xf]
      %v2092 = vld [vmem:[%s3 + $0x9c] sm:$0xf]
      %v2093 = vld [vmem:[%s3 + $0xa0] sm:$0xf]
      %v2094 = vld [vmem:[%s3 + $0xa4] sm:$0xf]
      %v2095 = vld [vmem:[%s3 + $0xa8] sm:$0xf]
      %v2096 = vld [vmem:[%s3 + $0xac] sm:$0xf]
      %v2097 = vld [vmem:[%s3 + $0xb0] sm:$0xf]
      %v2098 = vld [vmem:[%s3 + $0xb4] sm:$0xf]
      %v2099 = vld [vmem:[%s3 + $0xb8] sm:$0xf]
      %v2100 = vld [vmem:[%s3 + $0xbc] sm:$0xf]
      %v2101 = vld [vmem:[%s4] sm:$0x1]
      %v2103 = vlaneseq
      %v2104 = vshrl.u32 %v2103, 7
      %v2105 = vsub.s32 0, %v2104
      %v2106 = vrot.slane %v2101, %v2105
      %v2156 = vunpack.c.l.b16 %v2053
      %v2157 = vunpack.c.l.b16 %v2054
      %v2158 = vunpack.c.l.b16 %v2055
      %v2159 = vunpack.c.l.b16 %v2056
      %v2160 = vunpack.c.l.b16 %v2057
      %v2161 = vunpack.c.l.b16 %v2058
      %v2162 = vunpack.c.l.b16 %v2059
      %v2163 = vunpack.c.l.b16 %v2060
      %v2164 = vunpack.c.l.b16 %v2061
      %v2165 = vunpack.c.l.b16 %v2062
      %v2166 = vunpack.c.l.b16 %v2063
      %v2167 = vunpack.c.l.b16 %v2064
      %v2168 = vunpack.c.l.b16 %v2065
      %v2169 = vunpack.c.l.b16 %v2066
      %v2170 = vunpack.c.l.b16 %v2067
      %v2171 = vunpack.c.l.b16 %v2068
      %v2172 = vunpack.c.l.b16 %v2069
      %v2173 = vunpack.c.l.b16 %v2070
      %v2174 = vunpack.c.l.b16 %v2071
      %v2175 = vunpack.c.l.b16 %v2072
      %v2176 = vunpack.c.l.b16 %v2073
      %v2177 = vunpack.c.l.b16 %v2074
      %v2178 = vunpack.c.l.b16 %v2075
      %v2179 = vunpack.c.l.b16 %v2076
      %v2180 = vunpack.c.l.b16 %v2077
      %v2181 = vunpack.c.l.b16 %v2078
      %v2182 = vunpack.c.l.b16 %v2079
      %v2183 = vunpack.c.l.b16 %v2080
      %v2184 = vunpack.c.l.b16 %v2081
      %v2185 = vunpack.c.l.b16 %v2082
      %v2186 = vunpack.c.l.b16 %v2083
      %v2187 = vunpack.c.l.b16 %v2084
      %v2188 = vunpack.c.l.b16 %v2085
      %v2189 = vunpack.c.l.b16 %v2086
      %v2190 = vunpack.c.l.b16 %v2087
      %v2191 = vunpack.c.l.b16 %v2088
      %v2192 = vunpack.c.l.b16 %v2089
      %v2193 = vunpack.c.l.b16 %v2090
      %v2194 = vunpack.c.l.b16 %v2091
      %v2195 = vunpack.c.l.b16 %v2092
      %v2196 = vunpack.c.l.b16 %v2093
      %v2197 = vunpack.c.l.b16 %v2094
      %v2198 = vunpack.c.l.b16 %v2095
      %v2199 = vunpack.c.l.b16 %v2096
      %v2200 = vunpack.c.l.b16 %v2097
      %v2201 = vunpack.c.l.b16 %v2098
      %v2202 = vunpack.c.l.b16 %v2099
      %v2203 = vunpack.c.l.b16 %v2100
      %v2204 = vpack.c.b16 %v2157, %v2156
      %v2205 = vpack.c.b16 %v2159, %v2158
      %v2206 = vpack.c.b16 %v2161, %v2160
      %v2207 = vpack.c.b16 %v2163, %v2162
      %v2208 = vpack.c.b16 %v2165, %v2164
      %v2209 = vpack.c.b16 %v2167, %v2166
      %v2210 = vpack.c.b16 %v2169, %v2168
      %v2211 = vpack.c.b16 %v2171, %v2170
      %v2212 = vpack.c.b16 %v2173, %v2172
      %v2213 = vpack.c.b16 %v2175, %v2174
      %v2214 = vpack.c.b16 %v2177, %v2176
      %v2215 = vpack.c.b16 %v2179, %v2178
      %v2216 = vpack.c.b16 %v2181, %v2180
      %v2217 = vpack.c.b16 %v2183, %v2182
      %v2218 = vpack.c.b16 %v2185, %v2184
      %v2219 = vpack.c.b16 %v2187, %v2186
      %v2220 = vpack.c.b16 %v2189, %v2188
      %v2221 = vpack.c.b16 %v2191, %v2190
      %v2222 = vpack.c.b16 %v2193, %v2192
      %v2223 = vpack.c.b16 %v2195, %v2194
      %v2224 = vpack.c.b16 %v2197, %v2196
      %v2225 = vpack.c.b16 %v2199, %v2198
      %v2226 = vpack.c.b16 %v2201, %v2200
      %v2227 = vpack.c.b16 %v2203, %v2202
      %2252 = vmatprep.subr.bf16.mxu0 0
      %2253 = vmatpush1.bf16.msra.mxu0 %v2204
      %2254 = vmatprep.subr.bf16.mxu0 0
      %2255 = vmatpush1.bf16.msra.mxu0 %v2205
      %2256 = vmatprep.subr.bf16.mxu0 0
      %2257 = vmatpush1.bf16.msra.mxu0 %v2206
      %2258 = vmatprep.subr.bf16.mxu0 0
      %2259 = vmatpush1.bf16.msra.mxu0 %v2207
      %2260 = vmatprep.subr.bf16.mxu0 0
      %2261 = vmatpush1.bf16.msra.mxu0 %v2208
      %2262 = vmatprep.subr.bf16.mxu0 0
      %2263 = vmatpush1.bf16.msra.mxu0 %v2209
      %2264 = vmatprep.subr.bf16.mxu0 0
      %2265 = vmatpush1.bf16.msra.mxu0 %v2210
      %2266 = vmatprep.subr.bf16.mxu0 0
      %2267 = vmatpush1.bf16.msra.mxu0 %v2211
      %2268 = vmatprep.subr.bf16.mxu0 0
      %2269 = vmatpush1.bf16.msra.mxu0 %v2212
      %2270 = vmatprep.subr.bf16.mxu0 0
      %2271 = vmatpush1.bf16.msra.mxu0 %v2213
      %2272 = vmatprep.subr.bf16.mxu0 0
      %2273 = vmatpush1.bf16.msra.mxu0 %v2214
      %2274 = vmatprep.subr.bf16.mxu0 0
      %2275 = vmatpush1.bf16.msra.mxu0 %v2215
      %2276 = vmatprep.subr.bf16.mxu0 0
      %2277 = vmatpush1.bf16.msra.mxu0 %v2216
      %2278 = vmatprep.subr.bf16.mxu0 0
      %2279 = vmatpush1.bf16.msra.mxu0 %v2217
      %2280 = vmatprep.subr.bf16.mxu0 0
      %2281 = vmatpush1.bf16.msra.mxu0 %v2218
      %2282 = vmatprep.subr.bf16.mxu0 0
      %2283 = vmatpush1.bf16.msra.mxu0 %v2219
      %2284 = vmatprep.mubr.bf16.mxu0 %v2051
      %2285 = vmatmul.mubr.bf16.gmra.mrb[0].mxu0 %v2050
      %v2286 = vpop.f32.mrb[0].mxu0
      %v2287 = vadd.f32 %v2106, %v2286
      %v2288 = vpop.f32.mrb[0].mxu0
      %v2289 = vpop.f32.mrb[0].mxu0
      %v2290 = vpop.f32.mrb[0].mxu0
      %2291 = vdwg.mxu0
      %2292 = vmatprep.subr.bf16.mxu0 0
      %2293 = vmatpush1.bf16.msra.mxu0 %v2220
      %2294 = vmatprep.subr.bf16.mxu0 0
      %2295 = vmatpush1.bf16.msra.mxu0 %v2221
      %2296 = vmatprep.subr.bf16.mxu0 0
      %2297 = vmatpush1.bf16.msra.mxu0 %v2222
      %2298 = vmatprep.subr.bf16.mxu0 0
      %2299 = vmatpush1.bf16.msra.mxu0 %v2223
      %2300 = vmatprep.subr.bf16.mxu0 0
      %2301 = vmatpush1.bf16.msra.mxu0 %v2224
      %2302 = vmatprep.subr.bf16.mxu0 0
      %2303 = vmatpush1.bf16.msra.mxu0 %v2225
      %2304 = vmatprep.subr.bf16.mxu0 0
      %2305 = vmatpush1.bf16.msra.mxu0 %v2226
      %2306 = vmatprep.subr.bf16.mxu0 0
      %2307 = vmatpush1.bf16.msra.mxu0 %v2227
      %2308 = vmatprep.subr.bf16.mxu0 0
      %2309 = vmatpush1.bf16.msra.mxu0 0
      %2310 = vmatprep.subr.bf16.mxu0 0
      %2311 = vmatpush1.bf16.msra.mxu0 0
      %2312 = vmatprep.subr.bf16.mxu0 0
      %2313 = vmatpush1.bf16.msra.mxu0 0
      %2314 = vmatprep.subr.bf16.mxu0 0
      %2315 = vmatpush1.bf16.msra.mxu0 0
      %2316 = vmatprep.subr.bf16.mxu0 0
      %2317 = vmatpush1.bf16.msra.mxu0 0
      %2318 = vmatprep.subr.bf16.mxu0 0
      %2319 = vmatpush1.bf16.msra.mxu0 0
      %2320 = vmatprep.subr.bf16.mxu0 0
      %2321 = vmatpush1.bf16.msra.mxu0 0
      %2322 = vmatprep.subr.bf16.mxu0 0
      %2323 = vmatpush1.bf16.msra.mxu0 0
      %2324 = vmatprep.mubr.bf16.mxu0 0
      %2325 = vmatmul.mubr.bf16.gmra.mrb[0].mxu0 %v2052
      %v2326 = vpop.f32.mrb[0].mxu0
      %v2327 = vadd.f32 %v2287, %v2326
      %v2328 = vpop.f32.mrb[0].mxu0
      %v2329 = vpop.f32.mrb[0].mxu0
      %v2330 = vpop.f32.mrb[0].mxu0
      %2331 = vdwg.mxu0
      %2332 = vst [vmem:[%s224] sm:$0xff] %v2327
      %p2333 = scmp.lt.s32.totalorder %s16, 1
      %s2334 = scalar_select %p2333, %s16, 1
      %s2335 = smul.addr %s2334, 8
      %s2336 = scalar_lea.vmem %s5, %s2335
      // Predicated region
      $region41: #{textcnn_forward.1} parent=39 // pred_check
        %p2337 = pneg %p144
      $region42: #{textcnn_forward.1} parent=39 // pred_check_branch
        %2339 = sbr.rel (%p2337) target = $region44
      $region43: #{textcnn_forward.1} parent=39 // pred_region
        _
      $region44: #{textcnn_forward.1} parent=39 // pred_fallthru
        _
    $region40: #{textcnn_forward.1} parent=5 // pred_fallthru
      _
    %p2340 = scmp.le.s32.totalorder 2, %s11
    // Predicated region
    $region45: #{textcnn_forward.1} parent=5 // pred_check
      %p2341 = pneg %p2340
    $region46: #{textcnn_forward.1} parent=5 // pred_check_branch
      %2343 = sbr.rel (%p2341) target = $region48
    $region47: #{textcnn_forward.1} parent=5 // pred_region
      %s2344 = ssub.s32 %s11, 2
      // Predicated region
      $region49: #{textcnn_forward.1} parent=47 // pred_check
        %p2345 = pneg %p150
      $region50: #{textcnn_forward.1} parent=47 // pred_check_branch
        %2347 = sbr.rel (%p2345) target = $region52
      $region51: #{textcnn_forward.1} parent=47 // pred_region
        %p2348 = scmp.lt.s32.totalorder %s17, 1
        %s2349 = scalar_select %p2348, %s17, 1
        %s2350 = smul.addr %s2349, 8
        %s2351 = scalar_lea.vmem %s5, %s2350
      $region52: #{textcnn_forward.1} parent=47 // pred_fallthru
        _
    $region48: #{textcnn_forward.1} parent=5 // pred_fallthru
      _
  $region6: #{textcnn_forward.1} parent=0 // loop_footer
    %s15 = sadd.s32 1, %s11
  $region7: #{textcnn_forward.1} parent=0 // loop_footer_branch
    %10 = sbr.rel target = $region3
  $region8: #{textcnn_forward.1} parent=0 // loop_exit
    _

</llo_original>
